<compile_context>
chip_gen: v7x
topology: tpu7x:2x2x1
jax: 0.10.0
libtpu: 0.0.40
codegen_flags: <defaults>
</compile_context>

<pallas_src>
import functools

import jax
import jax.numpy as jnp
import numpy as np
from jax.experimental import pallas as pl
from jax.experimental.pallas import tpu as pltpu

EPS = 1e-5


def _round_up(v, m):
    return (v + m - 1) // m * m


def _pad_to(a, shape):
    return jnp.pad(a, [(0, s - d) for d, s in zip(a.shape, shape)])


def gin_kernel(x_ref, src_ref, dst_ref, ee_ref,
               ln_s_ref, ln_b_ref,
               w1_ref, b1_ref,
               bn_s_ref, bn_b_ref,
               w2_ref, b2_ref,
               out_ref,
               goh_ref, soh_ref):
    """One grid step == one GIN layer. out_ref is the resident h carry."""
    layer = pl.program_id(0)
    n_layer = pl.num_programs(0)

    @pl.when(layer == 0)
    def _init():
        # h_list[0] = x
        out_ref[...] = x_ref[...]
        # Build one-hot gather/scatter once from int32 edge indices and cache
        # them in bf16 VMEM scratch. Padded edges use index -1 -> all-zero rows.
        e_pad, n_pad = goh_ref.shape
        col_iota = jax.lax.broadcasted_iota(jnp.int32, (e_pad, n_pad), 1)
        goh_ref[...] = (src_ref[...] == col_iota).astype(jnp.bfloat16)  # [E, N]
        row_iota = jax.lax.broadcasted_iota(jnp.int32, (n_pad, e_pad), 0)
        soh_ref[...] = (dst_ref[...] == row_iota).astype(jnp.bfloat16)  # [N, E]

    h = out_ref[...]                                              # [N, D] f32

    # --- pre-layer BatchNorm1d (eval mode), folded scale/shift ---
    hn = h * ln_s_ref[...] + ln_b_ref[...]

    # --- GINConv.propagate: message = relu(x_j + edge_emb), aggr = 'add' ---
    hn_b = hn.astype(jnp.bfloat16)
    x_j = jnp.dot(goh_ref[...], hn_b,
                  preferred_element_type=jnp.float32)             # [E, D]
    msg = jnp.maximum(x_j + ee_ref[...], 0.0)
    agg = jnp.dot(soh_ref[...], msg.astype(jnp.bfloat16),
                  preferred_element_type=jnp.float32)             # [N, D]

    # --- GINConv.mlp on (x + agg): Linear -> BN(eval) -> ReLU -> Linear ---
    z = hn + agg
    z = jnp.dot(z.astype(jnp.bfloat16), w1_ref[...],
                preferred_element_type=jnp.float32) + b1_ref[...]
    z = z * bn_s_ref[...] + bn_b_ref[...]
    z = jnp.maximum(z, 0.0)
    h_new = jnp.dot(z.astype(jnp.bfloat16), w2_ref[...],
                    preferred_element_type=jnp.float32) + b2_ref[...]

    # --- outer: relu for non-last layers; dropout(p=0) is identity ---
    @pl.when(layer < n_layer - 1)
    def _mid():
        out_ref[...] = jnp.maximum(h_new, 0.0)

    @pl.when(layer == n_layer - 1)
    def _last():
        out_ref[...] = h_new


def gin_forward(x, src, dst, edge_emb, params, *, num_layer):
    """x: [N, D] f32; src/dst: [E] int32; edge_emb: [E, D] f32."""
    N, D = x.shape
    E = src.shape[0]
    L = num_layer

    D_pad = _round_up(D, 128)
    N_pad = _round_up(N, 128)
    E_pad = _round_up(E, 128)

    # Lane-padded dense inputs (padded node/edge rows and padded feature
    # columns are zero and provably stay zero / inert through all layers).
    xp = _pad_to(x, (N_pad, D_pad))
    eep = _pad_to(edge_emb, (E_pad, D_pad))
    # Padded edges point to index -1, which never matches any node id.
    src_p = jnp.full((E_pad, 1), -1, jnp.int32).at[:E, 0].set(src.astype(jnp.int32))
    dst_p = jnp.full((1, E_pad), -1, jnp.int32).at[0, :E].set(dst.astype(jnp.int32))

    # Fold BatchNorm (eval) into per-layer scale/shift; pad and cast weights.
    ln_scale = params["ln_gamma"] * jax.lax.rsqrt(params["ln_var"] + EPS)
    ln_shift = params["ln_beta"] - params["ln_mean"] * ln_scale
    bn_scale = params["bn_gamma"] * jax.lax.rsqrt(params["bn_var"] + EPS)
    bn_shift = params["bn_beta"] - params["bn_mean"] * bn_scale

    ln_scale = _pad_to(ln_scale, (L, 1, D_pad))
    ln_shift = _pad_to(ln_shift, (L, 1, D_pad))
    bn_scale = _pad_to(bn_scale, (L, 1, D_pad))
    bn_shift = _pad_to(bn_shift, (L, 1, D_pad))
    w1 = _pad_to(params["w1"], (L, D_pad, D_pad)).astype(jnp.bfloat16)
    w2 = _pad_to(params["w2"], (L, D_pad, D_pad)).astype(jnp.bfloat16)
    b1 = _pad_to(params["b1"], (L, 1, D_pad))
    b2 = _pad_to(params["b2"], (L, 1, D_pad))

    full = lambda shape: pl.BlockSpec(shape, lambda l: (0, 0))
    vec = pl.BlockSpec((pl.Squeezed(), 1, D_pad), lambda l: (l, 0, 0))
    mat = pl.BlockSpec((pl.Squeezed(), D_pad, D_pad), lambda l: (l, 0, 0))

    in_specs = [
        full((N_pad, D_pad)),      # x
        full((E_pad, 1)),          # src (column of edge source ids)
        full((1, E_pad)),          # dst (row of edge target ids)
        full((E_pad, D_pad)),      # edge embedding
        vec, vec,                  # pre-layer BN scale/shift
        mat, vec,                  # W1, b1
        vec, vec,                  # mlp BN scale/shift
        mat, vec,                  # W2, b2
    ]

    out = pl.pallas_call(
        gin_kernel,
        out_shape=jax.ShapeDtypeStruct((N_pad, D_pad), jnp.float32),
        grid=(num_layer,),
        in_specs=in_specs,
        out_specs=pl.BlockSpec((N_pad, D_pad), lambda l: (0, 0)),
        scratch_shapes=[
            pltpu.VMEM((E_pad, N_pad), jnp.bfloat16),   # gather one-hot
            pltpu.VMEM((N_pad, E_pad), jnp.bfloat16),   # scatter one-hot
        ],
        compiler_params=pltpu.CompilerParams(
            dimension_semantics=("arbitrary",)),
    )(
        xp, src_p, dst_p, eep,
        ln_scale, ln_shift,
        w1, b1,
        bn_scale, bn_shift,
        w2, b2,
    )
    return out[:N, :D]


def gin_reference(x, src, dst, edge_emb, params, *, num_layer):
    """Plain-JAX reference mirroring the PyTorch eval-mode forward.
    Matmul inputs are rounded to bf16 at the same points as the kernel's MXU
    path (accumulation and element-wise math stay f32)."""
    h = x
    N, D = x.shape
    bf = lambda a: a.astype(jnp.bfloat16).astype(jnp.float32)
    for l in range(num_layer):
        scale = params["ln_gamma"][l, 0] * jax.lax.rsqrt(params["ln_var"][l, 0] + EPS)
        shift = params["ln_beta"][l, 0] - params["ln_mean"][l, 0] * scale
        hn = h * scale + shift
        msg = jax.nn.relu(bf(hn)[src] + edge_emb)
        agg = jnp.zeros((N, D), jnp.float32).at[dst].add(bf(msg))
        z = hn + agg
        z = bf(z) @ bf(params["w1"][l]) + params["b1"][l, 0]
        scale = params["bn_gamma"][l, 0] * jax.lax.rsqrt(params["bn_var"][l, 0] + EPS)
        shift = params["bn_beta"][l, 0] - params["bn_mean"][l, 0] * scale
        z = jax.nn.relu(z * scale + shift)
        h_new = bf(z) @ bf(params["w2"][l]) + params["b2"][l, 0]
        h = h_new if l == num_layer - 1 else jax.nn.relu(h_new)
    return h


def init_params(key, num_layer, emb_dim):
    """Deterministic synthetic init (shapes follow the module __init__)."""
    ks = jax.random.split(key, 12)
    bound = 1.0 / np.sqrt(emb_dim)
    u = lambda k, shape, lo, hi: jax.random.uniform(k, shape, jnp.float32, lo, hi)
    L, D = num_layer, emb_dim
    return {
        # pre-layer BatchNorm1d (eval running stats + affine)
        "ln_mean": 0.1 * jax.random.normal(ks[0], (L, 1, D), jnp.float32),
        "ln_var": u(ks[1], (L, 1, D), 0.5, 1.5),
        "ln_gamma": u(ks[2], (L, 1, D), 0.5, 1.5),
        "ln_beta": 0.1 * jax.random.normal(ks[3], (L, 1, D), jnp.float32),
        # GINConv.mlp Linear1 / BN / Linear2
        "w1": u(ks[4], (L, D, D), -bound, bound),
        "b1": u(ks[5], (L, 1, D), -bound, bound),
        "bn_mean": 0.1 * jax.random.normal(ks[6], (L, 1, D), jnp.float32),
        "bn_var": u(ks[7], (L, 1, D), 0.5, 1.5),
        "bn_gamma": u(ks[8], (L, 1, D), 0.5, 1.5),
        "bn_beta": 0.1 * jax.random.normal(ks[9], (L, 1, D), jnp.float32),
        "w2": u(ks[10], (L, D, D), -bound, bound),
        "b2": u(ks[11], (L, 1, D), -bound, bound),
    }


if __name__ == "__main__":
    num_layer = 3
    emb_dim = 32
    N, E = 32, 64
    num_bond_feats, bond_vocab = 3, 8

    key = jax.random.PRNGKey(0)
    k_x, k_e, k_attr, k_emb, k_p = jax.random.split(key, 5)

    x = jax.random.normal(k_x, (N, emb_dim), jnp.float32)
    edge_index = jax.random.randint(k_e, (2, E), 0, N, jnp.int32)
    edge_attr = jax.random.randint(k_attr, (E, num_bond_feats), 0, bond_vocab,
                                   jnp.int32)

    # BondEncoder: sum of per-feature embedding tables (gather done as glue).
    bond_tables = 0.1 * jax.random.normal(
        k_emb, (num_bond_feats, bond_vocab, emb_dim), jnp.float32)
    edge_emb = jnp.zeros((E, emb_dim), jnp.float32)
    for f in range(num_bond_feats):
        edge_emb = edge_emb + bond_tables[f][edge_attr[:, f]]

    params = init_params(k_p, num_layer, emb_dim)

    src, dst = edge_index[0], edge_index[1]   # PyG flow: source -> target

    run = jax.jit(functools.partial(gin_forward, num_layer=num_layer))
    out = run(x, src, dst, edge_emb, params)
    jax.block_until_ready(out)

    ref = gin_reference(x, src, dst, edge_emb, params, num_layer=num_layer)
    assert out.shape == (N, emb_dim)
    assert np.allclose(np.asarray(out), np.asarray(ref), rtol=1e-2, atol=1e-2), (
        float(np.max(np.abs(np.asarray(out) - np.asarray(ref)))))

    print("KERNEL_OK")
</pallas_src>

<mosaic_0001>
module attributes {stable_mosaic.version = 11 : i64} {
  func.func @gin_kernel(%arg0: i32, %arg1: memref<128x128xf32, #tpu.memory_space<vmem>>, %arg2: memref<128x1xi32, #tpu.memory_space<vmem>>, %arg3: memref<1x128xi32, #tpu.memory_space<vmem>>, %arg4: memref<128x128xf32, #tpu.memory_space<vmem>>, %arg5: memref<1x1x128xf32, #tpu.memory_space<vmem>>, %arg6: memref<1x1x128xf32, #tpu.memory_space<vmem>>, %arg7: memref<1x128x128xbf16, #tpu.memory_space<vmem>>, %arg8: memref<1x1x128xf32, #tpu.memory_space<vmem>>, %arg9: memref<1x1x128xf32, #tpu.memory_space<vmem>>, %arg10: memref<1x1x128xf32, #tpu.memory_space<vmem>>, %arg11: memref<1x128x128xbf16, #tpu.memory_space<vmem>>, %arg12: memref<1x1x128xf32, #tpu.memory_space<vmem>>, %arg13: memref<128x128xf32, #tpu.memory_space<vmem>>, %arg14: memref<128x128xbf16, #tpu.memory_space<vmem>>, %arg15: memref<128x128xbf16, #tpu.memory_space<vmem>>) attributes {dimension_semantics = [#tpu.dimension_semantics<arbitrary>], iteration_bounds = array<i64: 3>, scalar_prefetch = 0 : i64, scratch_operands = 2 : i64, tpu.core_type = #tpu.core_type<tc>, window_params = [{pipeline_mode = #tpu.pipeline_mode<synchronous>, transform_indices = @transform_0, window_bounds = array<i64: 128, 128>}, {pipeline_mode = #tpu.pipeline_mode<synchronous>, transform_indices = @transform_1, window_bounds = array<i64: 128, 1>}, {pipeline_mode = #tpu.pipeline_mode<synchronous>, transform_indices = @transform_2, window_bounds = array<i64: 1, 128>}, {pipeline_mode = #tpu.pipeline_mode<synchronous>, transform_indices = @transform_3, window_bounds = array<i64: 128, 128>}, {transform_indices = @transform_4, window_bounds = array<i64: 1, 1, 128>}, {transform_indices = @transform_5, window_bounds = array<i64: 1, 1, 128>}, {transform_indices = @transform_6, window_bounds = array<i64: 1, 128, 128>}, {transform_indices = @transform_7, window_bounds = array<i64: 1, 1, 128>}, {transform_indices = @transform_8, window_bounds = array<i64: 1, 1, 128>}, {transform_indices = @transform_9, window_bounds = array<i64: 1, 1, 128>}, {transform_indices = @transform_10, window_bounds = array<i64: 1, 128, 128>}, {transform_indices = @transform_11, window_bounds = array<i64: 1, 1, 128>}, {pipeline_mode = #tpu.pipeline_mode<synchronous>, transform_indices = @transform_12, window_bounds = array<i64: 128, 128>}]} {
    %c0_i32 = arith.constant 0 : i32
    %0 = arith.cmpi eq, %arg0, %c0_i32 : i32
    %1 = arith.extui %0 : i1 to i32
    %c0_i32_0 = arith.constant 0 : i32
    %2 = arith.cmpi ne, %1, %c0_i32_0 : i32
    scf.if %2 {
      %c0_40 = arith.constant 0 : index
      %c0_41 = arith.constant 0 : index
      %55 = vector.load %arg1[%c0_40, %c0_41] : memref<128x128xf32, #tpu.memory_space<vmem>>, vector<128x128xf32>
      %c0_42 = arith.constant 0 : index
      %c0_43 = arith.constant 0 : index
      %56 = vector.load %arg13[%c0_42, %c0_43] : memref<128x128xf32, #tpu.memory_space<vmem>>, vector<128x128xf32>
      tpu.vector_store %arg13[%c0_42, %c0_43], %55 {strides = array<i32>} : memref<128x128xf32, #tpu.memory_space<vmem>>, vector<128x128xf32>,
      %57 = tpu.iota {dimensions = array<i32: 1>} : vector<128x128xi32>
      %c0_44 = arith.constant 0 : index
      %c0_45 = arith.constant 0 : index
      %58 = vector.load %arg2[%c0_44, %c0_45] : memref<128x1xi32, #tpu.memory_space<vmem>>, vector<128x1xi32>
      %59 = vector.broadcast %58 : vector<128x1xi32> to vector<128x128xi32>
      %60 = arith.cmpi eq, %59, %57 : vector<128x128xi32>
      %61 = arith.extui %60 : vector<128x128xi1> to vector<128x128xi32>
      %62 = arith.sitofp %61 : vector<128x128xi32> to vector<128x128xf32>
      %63 = arith.truncf %62 : vector<128x128xf32> to vector<128x128xbf16>
      %c0_46 = arith.constant 0 : index
      %c0_47 = arith.constant 0 : index
      %64 = vector.load %arg14[%c0_46, %c0_47] : memref<128x128xbf16, #tpu.memory_space<vmem>>, vector<128x128xbf16>
      tpu.vector_store %arg14[%c0_46, %c0_47], %63 {strides = array<i32>} : memref<128x128xbf16, #tpu.memory_space<vmem>>, vector<128x128xbf16>,
      %65 = tpu.iota {dimensions = array<i32: 0>} : vector<128x128xi32>
      %c0_48 = arith.constant 0 : index
      %c0_49 = arith.constant 0 : index
      %66 = vector.load %arg3[%c0_48, %c0_49] : memref<1x128xi32, #tpu.memory_space<vmem>>, vector<1x128xi32>
      %67 = vector.broadcast %66 : vector<1x128xi32> to vector<128x128xi32>
      %68 = arith.cmpi eq, %67, %65 : vector<128x128xi32>
      %69 = arith.extui %68 : vector<128x128xi1> to vector<128x128xi32>
      %70 = arith.sitofp %69 : vector<128x128xi32> to vector<128x128xf32>
      %71 = arith.truncf %70 : vector<128x128xf32> to vector<128x128xbf16>
      %c0_50 = arith.constant 0 : index
      %c0_51 = arith.constant 0 : index
      %72 = vector.load %arg15[%c0_50, %c0_51] : memref<128x128xbf16, #tpu.memory_space<vmem>>, vector<128x128xbf16>
      tpu.vector_store %arg15[%c0_50, %c0_51], %71 {strides = array<i32>} : memref<128x128xbf16, #tpu.memory_space<vmem>>, vector<128x128xbf16>,
    } else {
    }
    %c0 = arith.constant 0 : index
    %c0_1 = arith.constant 0 : index
    %3 = vector.load %arg13[%c0, %c0_1] : memref<128x128xf32, #tpu.memory_space<vmem>>, vector<128x128xf32>
    %c0_2 = arith.constant 0 : index
    %c0_3 = arith.constant 0 : index
    %c0_4 = arith.constant 0 : index
    %4 = vector.load %arg5[%c0_2, %c0_3, %c0_4] : memref<1x1x128xf32, #tpu.memory_space<vmem>>, vector<1x1x128xf32>
    %5 = vector.shape_cast %4 : vector<1x1x128xf32> to vector<1x128xf32>
    %6 = vector.broadcast %5 : vector<1x128xf32> to vector<128x128xf32>
    %7 = arith.mulf %3, %6 : vector<128x128xf32>
    %c0_5 = arith.constant 0 : index
    %c0_6 = arith.constant 0 : index
    %c0_7 = arith.constant 0 : index
    %8 = vector.load %arg6[%c0_5, %c0_6, %c0_7] : memref<1x1x128xf32, #tpu.memory_space<vmem>>, vector<1x1x128xf32>
    %9 = vector.shape_cast %8 : vector<1x1x128xf32> to vector<1x128xf32>
    %10 = vector.broadcast %9 : vector<1x128xf32> to vector<128x128xf32>
    %11 = arith.addf %7, %10 : vector<128x128xf32>
    %12 = arith.truncf %11 : vector<128x128xf32> to vector<128x128xbf16>
    %c0_8 = arith.constant 0 : index
    %c0_9 = arith.constant 0 : index
    %13 = vector.load %arg14[%c0_8, %c0_9] : memref<128x128xbf16, #tpu.memory_space<vmem>>, vector<128x128xbf16>
    %cst = arith.constant dense<0.000000e+00> : vector<128x128xf32>
    %14 = tpu.matmul %13, %12, %cst {dimension_numbers = #tpu.dot_dimension_numbers<[1], [0], [0], [1], [0, 0, 1, 1], [], []>} : vector<128x128xbf16>, vector<128x128xbf16>, vector<128x128xf32> -> vector<128x128xf32>
    %c0_10 = arith.constant 0 : index
    %c0_11 = arith.constant 0 : index
    %15 = vector.load %arg4[%c0_10, %c0_11] : memref<128x128xf32, #tpu.memory_space<vmem>>, vector<128x128xf32>
    %16 = arith.addf %14, %15 : vector<128x128xf32>
    %cst_12 = arith.constant 0.000000e+00 : f32
    %17 = vector.broadcast %cst_12 : f32 to vector<128x128xf32>
    %18 = arith.maximumf %16, %17 : vector<128x128xf32>
    %c0_13 = arith.constant 0 : index
    %c0_14 = arith.constant 0 : index
    %19 = vector.load %arg15[%c0_13, %c0_14] : memref<128x128xbf16, #tpu.memory_space<vmem>>, vector<128x128xbf16>
    %20 = arith.truncf %18 : vector<128x128xf32> to vector<128x128xbf16>
    %cst_15 = arith.constant dense<0.000000e+00> : vector<128x128xf32>
    %21 = tpu.matmul %19, %20, %cst_15 {dimension_numbers = #tpu.dot_dimension_numbers<[1], [0], [0], [1], [0, 0, 1, 1], [], []>} : vector<128x128xbf16>, vector<128x128xbf16>, vector<128x128xf32> -> vector<128x128xf32>
    %22 = arith.addf %11, %21 : vector<128x128xf32>
    %23 = arith.truncf %22 : vector<128x128xf32> to vector<128x128xbf16>
    %c0_16 = arith.constant 0 : index
    %c0_17 = arith.constant 0 : index
    %c0_18 = arith.constant 0 : index
    %24 = vector.load %arg7[%c0_16, %c0_17, %c0_18] : memref<1x128x128xbf16, #tpu.memory_space<vmem>>, vector<1x128x128xbf16>
    %25 = vector.shape_cast %24 : vector<1x128x128xbf16> to vector<128x128xbf16>
    %cst_19 = arith.constant dense<0.000000e+00> : vector<128x128xf32>
    %26 = tpu.matmul %23, %25, %cst_19 {dimension_numbers = #tpu.dot_dimension_numbers<[1], [0], [0], [1], [0, 0, 1, 1], [], []>} : vector<128x128xbf16>, vector<128x128xbf16>, vector<128x128xf32> -> vector<128x128xf32>
    %c0_20 = arith.constant 0 : index
    %c0_21 = arith.constant 0 : index
    %c0_22 = arith.constant 0 : index
    %27 = vector.load %arg8[%c0_20, %c0_21, %c0_22] : memref<1x1x128xf32, #tpu.memory_space<vmem>>, vector<1x1x128xf32>
    %28 = vector.shape_cast %27 : vector<1x1x128xf32> to vector<1x128xf32>
    %29 = vector.broadcast %28 : vector<1x128xf32> to vector<128x128xf32>
    %30 = arith.addf %26, %29 : vector<128x128xf32>
    %c0_23 = arith.constant 0 : index
    %c0_24 = arith.constant 0 : index
    %c0_25 = arith.constant 0 : index
    %31 = vector.load %arg9[%c0_23, %c0_24, %c0_25] : memref<1x1x128xf32, #tpu.memory_space<vmem>>, vector<1x1x128xf32>
    %32 = vector.shape_cast %31 : vector<1x1x128xf32> to vector<1x128xf32>
    %33 = vector.broadcast %32 : vector<1x128xf32> to vector<128x128xf32>
    %34 = arith.mulf %30, %33 : vector<128x128xf32>
    %c0_26 = arith.constant 0 : index
    %c0_27 = arith.constant 0 : index
    %c0_28 = arith.constant 0 : index
    %35 = vector.load %arg10[%c0_26, %c0_27, %c0_28] : memref<1x1x128xf32, #tpu.memory_space<vmem>>, vector<1x1x128xf32>
    %36 = vector.shape_cast %35 : vector<1x1x128xf32> to vector<1x128xf32>
    %37 = vector.broadcast %36 : vector<1x128xf32> to vector<128x128xf32>
    %38 = arith.addf %34, %37 : vector<128x128xf32>
    %cst_29 = arith.constant 0.000000e+00 : f32
    %39 = vector.broadcast %cst_29 : f32 to vector<128x128xf32>
    %40 = arith.maximumf %38, %39 : vector<128x128xf32>
    %41 = arith.truncf %40 : vector<128x128xf32> to vector<128x128xbf16>
    %c0_30 = arith.constant 0 : index
    %c0_31 = arith.constant 0 : index
    %c0_32 = arith.constant 0 : index
    %42 = vector.load %arg11[%c0_30, %c0_31, %c0_32] : memref<1x128x128xbf16, #tpu.memory_space<vmem>>, vector<1x128x128xbf16>
    %43 = vector.shape_cast %42 : vector<1x128x128xbf16> to vector<128x128xbf16>
    %cst_33 = arith.constant dense<0.000000e+00> : vector<128x128xf32>
    %44 = tpu.matmul %41, %43, %cst_33 {dimension_numbers = #tpu.dot_dimension_numbers<[1], [0], [0], [1], [0, 0, 1, 1], [], []>} : vector<128x128xbf16>, vector<128x128xbf16>, vector<128x128xf32> -> vector<128x128xf32>
    %c0_34 = arith.constant 0 : index
    %c0_35 = arith.constant 0 : index
    %c0_36 = arith.constant 0 : index
    %45 = vector.load %arg12[%c0_34, %c0_35, %c0_36] : memref<1x1x128xf32, #tpu.memory_space<vmem>>, vector<1x1x128xf32>
    %46 = vector.shape_cast %45 : vector<1x1x128xf32> to vector<1x128xf32>
    %47 = vector.broadcast %46 : vector<1x128xf32> to vector<128x128xf32>
    %48 = arith.addf %44, %47 : vector<128x128xf32>
    %c2_i32 = arith.constant 2 : i32
    %49 = arith.cmpi slt, %arg0, %c2_i32 : i32
    %50 = arith.extui %49 : i1 to i32
    %c0_i32_37 = arith.constant 0 : i32
    %51 = arith.cmpi ne, %50, %c0_i32_37 : i32
    scf.if %51 {
      %cst_40 = arith.constant 0.000000e+00 : f32
      %55 = vector.broadcast %cst_40 : f32 to vector<128x128xf32>
      %56 = arith.maximumf %48, %55 : vector<128x128xf32>
      %c0_41 = arith.constant 0 : index
      %c0_42 = arith.constant 0 : index
      %57 = vector.load %arg13[%c0_41, %c0_42] : memref<128x128xf32, #tpu.memory_space<vmem>>, vector<128x128xf32>
      tpu.vector_store %arg13[%c0_41, %c0_42], %56 {strides = array<i32>} : memref<128x128xf32, #tpu.memory_space<vmem>>, vector<128x128xf32>,
    } else {
    }
    %c2_i32_38 = arith.constant 2 : i32
    %52 = arith.cmpi eq, %arg0, %c2_i32_38 : i32
    %53 = arith.extui %52 : i1 to i32
    %c0_i32_39 = arith.constant 0 : i32
    %54 = arith.cmpi ne, %53, %c0_i32_39 : i32
    scf.if %54 {
      %c0_40 = arith.constant 0 : index
      %c0_41 = arith.constant 0 : index
      %55 = vector.load %arg13[%c0_40, %c0_41] : memref<128x128xf32, #tpu.memory_space<vmem>>, vector<128x128xf32>
      tpu.vector_store %arg13[%c0_40, %c0_41], %48 {strides = array<i32>} : memref<128x128xf32, #tpu.memory_space<vmem>>, vector<128x128xf32>,
    } else {
    }
    return
  }
  func.func @transform_0(%arg0: i32) -> (i32, i32) {
    %c0_i32 = arith.constant 0 : i32
    %c0_i32_0 = arith.constant 0 : i32
    %c0_i32_1 = arith.constant 0 : i32
    return %c0_i32, %c0_i32_0 : i32, i32
  }
  func.func @transform_1(%arg0: i32) -> (i32, i32) {
    %c0_i32 = arith.constant 0 : i32
    %c0_i32_0 = arith.constant 0 : i32
    %c0_i32_1 = arith.constant 0 : i32
    return %c0_i32, %c0_i32_0 : i32, i32
  }
  func.func @transform_2(%arg0: i32) -> (i32, i32) {
    %c0_i32 = arith.constant 0 : i32
    %c0_i32_0 = arith.constant 0 : i32
    %c0_i32_1 = arith.constant 0 : i32
    return %c0_i32, %c0_i32_0 : i32, i32
  }
  func.func @transform_3(%arg0: i32) -> (i32, i32) {
    %c0_i32 = arith.constant 0 : i32
    %c0_i32_0 = arith.constant 0 : i32
    %c0_i32_1 = arith.constant 0 : i32
    return %c0_i32, %c0_i32_0 : i32, i32
  }
  func.func @transform_4(%arg0: i32) -> (i32, i32, i32) {
    %c0_i32 = arith.constant 0 : i32
    %c0_i32_0 = arith.constant 0 : i32
    %c0_i32_1 = arith.constant 0 : i32
    return %arg0, %c0_i32, %c0_i32_0 : i32, i32, i32
  }
  func.func @transform_5(%arg0: i32) -> (i32, i32, i32) {
    %c0_i32 = arith.constant 0 : i32
    %c0_i32_0 = arith.constant 0 : i32
    %c0_i32_1 = arith.constant 0 : i32
    return %arg0, %c0_i32, %c0_i32_0 : i32, i32, i32
  }
  func.func @transform_6(%arg0: i32) -> (i32, i32, i32) {
    %c0_i32 = arith.constant 0 : i32
    %c0_i32_0 = arith.constant 0 : i32
    %c0_i32_1 = arith.constant 0 : i32
    return %arg0, %c0_i32, %c0_i32_0 : i32, i32, i32
  }
  func.func @transform_7(%arg0: i32) -> (i32, i32, i32) {
    %c0_i32 = arith.constant 0 : i32
    %c0_i32_0 = arith.constant 0 : i32
    %c0_i32_1 = arith.constant 0 : i32
    return %arg0, %c0_i32, %c0_i32_0 : i32, i32, i32
  }
  func.func @transform_8(%arg0: i32) -> (i32, i32, i32) {
    %c0_i32 = arith.constant 0 : i32
    %c0_i32_0 = arith.constant 0 : i32
    %c0_i32_1 = arith.constant 0 : i32
    return %arg0, %c0_i32, %c0_i32_0 : i32, i32, i32
  }
  func.func @transform_9(%arg0: i32) -> (i32, i32, i32) {
    %c0_i32 = arith.constant 0 : i32
    %c0_i32_0 = arith.constant 0 : i32
    %c0_i32_1 = arith.constant 0 : i32
    return %arg0, %c0_i32, %c0_i32_0 : i32, i32, i32
  }
  func.func @transform_10(%arg0: i32) -> (i32, i32, i32) {
    %c0_i32 = arith.constant 0 : i32
    %c0_i32_0 = arith.constant 0 : i32
    %c0_i32_1 = arith.constant 0 : i32
    return %arg0, %c0_i32, %c0_i32_0 : i32, i32, i32
  }
  func.func @transform_11(%arg0: i32) -> (i32, i32, i32) {
    %c0_i32 = arith.constant 0 : i32
    %c0_i32_0 = arith.constant 0 : i32
    %c0_i32_1 = arith.constant 0 : i32
    return %arg0, %c0_i32, %c0_i32_0 : i32, i32, i32
  }
  func.func @transform_12(%arg0: i32) -> (i32, i32) {
    %c0_i32 = arith.constant 0 : i32
    %c0_i32_0 = arith.constant 0 : i32
    %c0_i32_1 = arith.constant 0 : i32
    return %c0_i32, %c0_i32_0 : i32, i32
  }
}

</mosaic_0001>

<llo_original>
// kernel: gin_forward.1
$region0: #{gin_forward.1}
  #allocation0 [shape = 'u32[]', space=smem, size = 0x4, offset = 0x4, fixed_abs, tag = 'smem constant byte address 0x4 - core index']
  #allocation1 [shape = 'u32[144,128]{1,0:T(1,128)}', space=vmem, size = 0x12000, scoped, tag = 'internal scratch']
  #allocation2 [shape = 'bf16[128,128]{1,0:T(16,128)(2,1)}', space=vmem, size = 0x8000, scoped, tag = 'scratch operand']
  #allocation3 [shape = 'bf16[128,128]{1,0:T(16,128)(2,1)}', space=vmem, size = 0x8000, scoped, tag = 'scratch operand']
  %s0 = inlined_call_operand.vmem [shape: f32[128,128], index: 0, kind: input, shape index: {}]
  %s1 = inlined_call_operand.vmem [shape: s32[128,1], index: 1, kind: input, shape index: {}]
  %s2 = inlined_call_operand.vmem [shape: s32[1,128], index: 2, kind: input, shape index: {}]
  %s3 = inlined_call_operand.vmem [shape: f32[128,128], index: 3, kind: input, shape index: {}]
  %s4 = inlined_call_operand.vmem [shape: f32[3,1,128], index: 4, kind: input, shape index: {}]
  %s5 = inlined_call_operand.vmem [shape: f32[3,1,128], index: 5, kind: input, shape index: {}]
  %s6 = inlined_call_operand.vmem [shape: bf16[3,128,128], index: 6, kind: input, shape index: {}]
  %s7 = inlined_call_operand.vmem [shape: f32[3,1,128], index: 7, kind: input, shape index: {}]
  %s8 = inlined_call_operand.vmem [shape: f32[3,1,128], index: 8, kind: input, shape index: {}]
  %s9 = inlined_call_operand.vmem [shape: f32[3,1,128], index: 9, kind: input, shape index: {}]
  %s10 = inlined_call_operand.vmem [shape: bf16[3,128,128], index: 10, kind: input, shape index: {}]
  %s11 = inlined_call_operand.vmem [shape: f32[3,1,128], index: 11, kind: input, shape index: {}]
  %s12 = inlined_call_operand.vmem [shape: f32[128,128], index: 12, kind: output, shape index: {}]
  %s13 = sld [smem:[#allocation0]]
  $region93: #{gin_forward.1} parent=0
    _
  %s15 = ssub.s32 1, %s13
  %s16 = scalar_select 0, %s15, %s13
  loop: start=0, step=1, limit=5
  $region2: #{gin_forward.1} parent=0 // loop_pre_header
    _
  $region3: #{gin_forward.1} parent=0 // loop_header
    %s18 = sphi 0, %s22
    %p19 = scmp.ge.s32.totalorder %s18, 5
    %s26 = sphi 0, %s26
    %s28 = sphi 0, %s26
    %s29 = sphi 0, %s28
    %s43 = sphi 0, %s29
    %s47 = sphi 0, %s47
    %s49 = sphi 0, %s47
    %s50 = sphi 0, %s49
    %s64 = sphi 0, %s50
    %s68 = sphi 0, %s68
    %s70 = sphi 0, %s68
    %s71 = sphi 0, %s70
    %s85 = sphi 0, %s71
    %s89 = sphi 0, %s89
    %s91 = sphi 0, %s89
    %s92 = sphi 0, %s91
    %s106 = sphi 0, %s92
    %s112 = sphi 0, %s114
    %s115 = sphi 0, %s112
    %s116 = sphi 0, %s115
    %s132 = sphi 0, %s116
    %s138 = sphi 0, %s140
    %s141 = sphi 0, %s138
    %s142 = sphi 0, %s141
    %s158 = sphi 0, %s142
    %s164 = sphi 0, %s166
    %s167 = sphi 0, %s164
    %s168 = sphi 0, %s167
    %s184 = sphi 0, %s168
    %s190 = sphi 0, %s192
    %s193 = sphi 0, %s190
    %s194 = sphi 0, %s193
    %s210 = sphi 0, %s194
    %s216 = sphi 0, %s218
    %s219 = sphi 0, %s216
    %s220 = sphi 0, %s219
    %s236 = sphi 0, %s220
    %s242 = sphi 0, %s244
    %s245 = sphi 0, %s242
    %s246 = sphi 0, %s245
    %s262 = sphi 0, %s246
    %s268 = sphi 0, %s270
    %s271 = sphi 0, %s268
    %s272 = sphi 0, %s271
    %s288 = sphi 0, %s272
    %s294 = sphi 0, %s296
    %s297 = sphi 0, %s294
    %s298 = sphi 0, %s297
    %s314 = sphi 0, %s298
    %s318 = sphi 0, %s318
    %s320 = sphi 0, %s318
    %s321 = sphi 0, %s320
    %s335 = sphi 0, %s321
  $region4: #{gin_forward.1} parent=0 // loop_header_branch
    %21 = sbr.rel (%p19) target = $region8
  $region5: #{gin_forward.1} parent=0 // loop_body
    %s23 = ssub.s32 %s18, 1
    %s24 = ssub.s32 %s18, 2
    %s25 = sadd.s32 %s18, 1
    %s27 = sadd.s32 %s26, 1
    %p30 = scmp.eq.s32.totalorder %s18, 2
    %p31 = scmp.ne.s32.totalorder %s26, %s28
    %p32 = scmp.eq.s32.totalorder %s18, 0
    %p33 = por %p31, %p32
    %p34 = scmp.ne.s32.totalorder %s26, %s28
    %p35 = scmp.eq.s32.totalorder %s23, 2
    %p36 = por %p34, %p35
    %p37 = scmp.ne.s32.totalorder %s28, %s29
    %p38 = scmp.eq.s32.totalorder %s23, 0
    %p39 = por %p37, %p38
    %p40 = scmp.ne.s32.totalorder %s28, %s29
    %p41 = scmp.eq.s32.totalorder %s24, 2
    %p42 = por %p40, %p41
    %p44 = scmp.ne.s32.totalorder %s29, %s43
    %p45 = scmp.eq.s32.totalorder %s24, 0
    %p46 = por %p44, %p45
    %s48 = sadd.s32 %s47, 1
    %p51 = scmp.eq.s32.totalorder %s18, 2
    %p52 = scmp.ne.s32.totalorder %s47, %s49
    %p53 = scmp.eq.s32.totalorder %s18, 0
    %p54 = por %p52, %p53
    %p55 = scmp.ne.s32.totalorder %s47, %s49
    %p56 = scmp.eq.s32.totalorder %s23, 2
    %p57 = por %p55, %p56
    %p58 = scmp.ne.s32.totalorder %s49, %s50
    %p59 = scmp.eq.s32.totalorder %s23, 0
    %p60 = por %p58, %p59
    %p61 = scmp.ne.s32.totalorder %s49, %s50
    %p62 = scmp.eq.s32.totalorder %s24, 2
    %p63 = por %p61, %p62
    %p65 = scmp.ne.s32.totalorder %s50, %s64
    %p66 = scmp.eq.s32.totalorder %s24, 0
    %p67 = por %p65, %p66
    %s69 = sadd.s32 %s68, 1
    %p72 = scmp.eq.s32.totalorder %s18, 2
    %p73 = scmp.ne.s32.totalorder %s68, %s70
    %p74 = scmp.eq.s32.totalorder %s18, 0
    %p75 = por %p73, %p74
    %p76 = scmp.ne.s32.totalorder %s68, %s70
    %p77 = scmp.eq.s32.totalorder %s23, 2
    %p78 = por %p76, %p77
    %p79 = scmp.ne.s32.totalorder %s70, %s71
    %p80 = scmp.eq.s32.totalorder %s23, 0
    %p81 = por %p79, %p80
    %p82 = scmp.ne.s32.totalorder %s70, %s71
    %p83 = scmp.eq.s32.totalorder %s24, 2
    %p84 = por %p82, %p83
    %p86 = scmp.ne.s32.totalorder %s71, %s85
    %p87 = scmp.eq.s32.totalorder %s24, 0
    %p88 = por %p86, %p87
    %s90 = sadd.s32 %s89, 1
    %p93 = scmp.eq.s32.totalorder %s18, 2
    %p94 = scmp.ne.s32.totalorder %s89, %s91
    %p95 = scmp.eq.s32.totalorder %s18, 0
    %p96 = por %p94, %p95
    %p97 = scmp.ne.s32.totalorder %s89, %s91
    %p98 = scmp.eq.s32.totalorder %s23, 2
    %p99 = por %p97, %p98
    %p100 = scmp.ne.s32.totalorder %s91, %s92
    %p101 = scmp.eq.s32.totalorder %s23, 0
    %p102 = por %p100, %p101
    %p103 = scmp.ne.s32.totalorder %s91, %s92
    %p104 = scmp.eq.s32.totalorder %s24, 2
    %p105 = por %p103, %p104
    %p107 = scmp.ne.s32.totalorder %s92, %s106
    %p108 = scmp.eq.s32.totalorder %s24, 0
    %p109 = por %p107, %p108
    %s110 = ssub.s32 %s18, %s25
    %p111 = scmp.eq.s32.totalorder %s110, 0
    %s113 = sadd.s32 %s112, 1
    %s114 = scalar_select %p111, %s112, %s113
    %p117 = pneg %p111
    %p118 = scmp.eq.s32.totalorder %s18, 2
    %p119 = por %p117, %p118
    %p120 = scmp.ne.s32.totalorder %s112, %s115
    %p121 = scmp.eq.s32.totalorder %s18, 0
    %p122 = por %p120, %p121
    %p123 = scmp.ne.s32.totalorder %s112, %s115
    %p124 = scmp.eq.s32.totalorder %s23, 2
    %p125 = por %p123, %p124
    %p126 = scmp.ne.s32.totalorder %s115, %s116
    %p127 = scmp.eq.s32.totalorder %s23, 0
    %p128 = por %p126, %p127
    %p129 = scmp.ne.s32.totalorder %s115, %s116
    %p130 = scmp.eq.s32.totalorder %s24, 2
    %p131 = por %p129, %p130
    %p133 = scmp.ne.s32.totalorder %s116, %s132
    %p134 = scmp.eq.s32.totalorder %s24, 0
    %p135 = por %p133, %p134
    %s136 = ssub.s32 %s18, %s25
    %p137 = scmp.eq.s32.totalorder %s136, 0
    %s139 = sadd.s32 %s138, 1
    %s140 = scalar_select %p137, %s138, %s139
    %p143 = pneg %p137
    %p144 = scmp.eq.s32.totalorder %s18, 2
    %p145 = por %p143, %p144
    %p146 = scmp.ne.s32.totalorder %s138, %s141
    %p147 = scmp.eq.s32.totalorder %s18, 0
    %p148 = por %p146, %p147
    %p149 = scmp.ne.s32.totalorder %s138, %s141
    %p150 = scmp.eq.s32.totalorder %s23, 2
    %p151 = por %p149, %p150
    %p152 = scmp.ne.s32.totalorder %s141, %s142
    %p153 = scmp.eq.s32.totalorder %s23, 0
    %p154 = por %p152, %p153
    %p155 = scmp.ne.s32.totalorder %s141, %s142
    %p156 = scmp.eq.s32.totalorder %s24, 2
    %p157 = por %p155, %p156
    %p159 = scmp.ne.s32.totalorder %s142, %s158
    %p160 = scmp.eq.s32.totalorder %s24, 0
    %p161 = por %p159, %p160
    %s162 = ssub.s32 %s18, %s25
    %p163 = scmp.eq.s32.totalorder %s162, 0
    %s165 = sadd.s32 %s164, 1
    %s166 = scalar_select %p163, %s164, %s165
    %p169 = pneg %p163
    %p170 = scmp.eq.s32.totalorder %s18, 2
    %p171 = por %p169, %p170
    %p172 = scmp.ne.s32.totalorder %s164, %s167
    %p173 = scmp.eq.s32.totalorder %s18, 0
    %p174 = por %p172, %p173
    %p175 = scmp.ne.s32.totalorder %s164, %s167
    %p176 = scmp.eq.s32.totalorder %s23, 2
    %p177 = por %p175, %p176
    %p178 = scmp.ne.s32.totalorder %s167, %s168
    %p179 = scmp.eq.s32.totalorder %s23, 0
    %p180 = por %p178, %p179
    %p181 = scmp.ne.s32.totalorder %s167, %s168
    %p182 = scmp.eq.s32.totalorder %s24, 2
    %p183 = por %p181, %p182
    %p185 = scmp.ne.s32.totalorder %s168, %s184
    %p186 = scmp.eq.s32.totalorder %s24, 0
    %p187 = por %p185, %p186
    %s188 = ssub.s32 %s18, %s25
    %p189 = scmp.eq.s32.totalorder %s188, 0
    %s191 = sadd.s32 %s190, 1
    %s192 = scalar_select %p189, %s190, %s191
    %p195 = pneg %p189
    %p196 = scmp.eq.s32.totalorder %s18, 2
    %p197 = por %p195, %p196
    %p198 = scmp.ne.s32.totalorder %s190, %s193
    %p199 = scmp.eq.s32.totalorder %s18, 0
    %p200 = por %p198, %p199
    %p201 = scmp.ne.s32.totalorder %s190, %s193
    %p202 = scmp.eq.s32.totalorder %s23, 2
    %p203 = por %p201, %p202
    %p204 = scmp.ne.s32.totalorder %s193, %s194
    %p205 = scmp.eq.s32.totalorder %s23, 0
    %p206 = por %p204, %p205
    %p207 = scmp.ne.s32.totalorder %s193, %s194
    %p208 = scmp.eq.s32.totalorder %s24, 2
    %p209 = por %p207, %p208
    %p211 = scmp.ne.s32.totalorder %s194, %s210
    %p212 = scmp.eq.s32.totalorder %s24, 0
    %p213 = por %p211, %p212
    %s214 = ssub.s32 %s18, %s25
    %p215 = scmp.eq.s32.totalorder %s214, 0
    %s217 = sadd.s32 %s216, 1
    %s218 = scalar_select %p215, %s216, %s217
    %p221 = pneg %p215
    %p222 = scmp.eq.s32.totalorder %s18, 2
    %p223 = por %p221, %p222
    %p224 = scmp.ne.s32.totalorder %s216, %s219
    %p225 = scmp.eq.s32.totalorder %s18, 0
    %p226 = por %p224, %p225
    %p227 = scmp.ne.s32.totalorder %s216, %s219
    %p228 = scmp.eq.s32.totalorder %s23, 2
    %p229 = por %p227, %p228
    %p230 = scmp.ne.s32.totalorder %s219, %s220
    %p231 = scmp.eq.s32.totalorder %s23, 0
    %p232 = por %p230, %p231
    %p233 = scmp.ne.s32.totalorder %s219, %s220
    %p234 = scmp.eq.s32.totalorder %s24, 2
    %p235 = por %p233, %p234
    %p237 = scmp.ne.s32.totalorder %s220, %s236
    %p238 = scmp.eq.s32.totalorder %s24, 0
    %p239 = por %p237, %p238
    %s240 = ssub.s32 %s18, %s25
    %p241 = scmp.eq.s32.totalorder %s240, 0
    %s243 = sadd.s32 %s242, 1
    %s244 = scalar_select %p241, %s242, %s243
    %p247 = pneg %p241
    %p248 = scmp.eq.s32.totalorder %s18, 2
    %p249 = por %p247, %p248
    %p250 = scmp.ne.s32.totalorder %s242, %s245
    %p251 = scmp.eq.s32.totalorder %s18, 0
    %p252 = por %p250, %p251
    %p253 = scmp.ne.s32.totalorder %s242, %s245
    %p254 = scmp.eq.s32.totalorder %s23, 2
    %p255 = por %p253, %p254
    %p256 = scmp.ne.s32.totalorder %s245, %s246
    %p257 = scmp.eq.s32.totalorder %s23, 0
    %p258 = por %p256, %p257
    %p259 = scmp.ne.s32.totalorder %s245, %s246
    %p260 = scmp.eq.s32.totalorder %s24, 2
    %p261 = por %p259, %p260
    %p263 = scmp.ne.s32.totalorder %s246, %s262
    %p264 = scmp.eq.s32.totalorder %s24, 0
    %p265 = por %p263, %p264
    %s266 = ssub.s32 %s18, %s25
    %p267 = scmp.eq.s32.totalorder %s266, 0
    %s269 = sadd.s32 %s268, 1
    %s270 = scalar_select %p267, %s268, %s269
    %p273 = pneg %p267
    %p274 = scmp.eq.s32.totalorder %s18, 2
    %p275 = por %p273, %p274
    %p276 = scmp.ne.s32.totalorder %s268, %s271
    %p277 = scmp.eq.s32.totalorder %s18, 0
    %p278 = por %p276, %p277
    %p279 = scmp.ne.s32.totalorder %s268, %s271
    %p280 = scmp.eq.s32.totalorder %s23, 2
    %p281 = por %p279, %p280
    %p282 = scmp.ne.s32.totalorder %s271, %s272
    %p283 = scmp.eq.s32.totalorder %s23, 0
    %p284 = por %p282, %p283
    %p285 = scmp.ne.s32.totalorder %s271, %s272
    %p286 = scmp.eq.s32.totalorder %s24, 2
    %p287 = por %p285, %p286
    %p289 = scmp.ne.s32.totalorder %s272, %s288
    %p290 = scmp.eq.s32.totalorder %s24, 0
    %p291 = por %p289, %p290
    %s292 = ssub.s32 %s18, %s25
    %p293 = scmp.eq.s32.totalorder %s292, 0
    %s295 = sadd.s32 %s294, 1
    %s296 = scalar_select %p293, %s294, %s295
    %p299 = pneg %p293
    %p300 = scmp.eq.s32.totalorder %s18, 2
    %p301 = por %p299, %p300
    %p302 = scmp.ne.s32.totalorder %s294, %s297
    %p303 = scmp.eq.s32.totalorder %s18, 0
    %p304 = por %p302, %p303
    %p305 = scmp.ne.s32.totalorder %s294, %s297
    %p306 = scmp.eq.s32.totalorder %s23, 2
    %p307 = por %p305, %p306
    %p308 = scmp.ne.s32.totalorder %s297, %s298
    %p309 = scmp.eq.s32.totalorder %s23, 0
    %p310 = por %p308, %p309
    %p311 = scmp.ne.s32.totalorder %s297, %s298
    %p312 = scmp.eq.s32.totalorder %s24, 2
    %p313 = por %p311, %p312
    %p315 = scmp.ne.s32.totalorder %s298, %s314
    %p316 = scmp.eq.s32.totalorder %s24, 0
    %p317 = por %p315, %p316
    %s319 = sadd.s32 %s318, 1
    %p322 = scmp.eq.s32.totalorder %s18, 2
    %p323 = scmp.ne.s32.totalorder %s318, %s320
    %p324 = scmp.eq.s32.totalorder %s18, 0
    %p325 = por %p323, %p324
    %p326 = scmp.ne.s32.totalorder %s318, %s320
    %p327 = scmp.eq.s32.totalorder %s23, 2
    %p328 = por %p326, %p327
    %p329 = scmp.ne.s32.totalorder %s320, %s321
    %p330 = scmp.eq.s32.totalorder %s23, 0
    %p331 = por %p329, %p330
    %p332 = scmp.ne.s32.totalorder %s320, %s321
    %p333 = scmp.eq.s32.totalorder %s24, 2
    %p334 = por %p332, %p333
    %p336 = scmp.ne.s32.totalorder %s321, %s335
    %p337 = scmp.eq.s32.totalorder %s24, 0
    %p338 = por %p336, %p337
    %p339 = scmp.le.s32.totalorder 1, %s18
    %p340 = scmp.lt.s32.totalorder %s18, 4
    %p341 = pnand %p339, %p340
    %p342 = pneg %p341
    // Predicated region
    $region9: #{gin_forward.1} parent=5 // pred_check
      _
    $region10: #{gin_forward.1} parent=5 // pred_check_branch
      %344 = sbr.rel (%p341) target = $region12
    $region11: #{gin_forward.1} parent=5 // pred_region
      %s345 = ssub.s32 %s18, 1
      // Predicated region
      $region13: #{gin_forward.1} parent=11 // pred_check
        %p346 = pneg %p39
      $region14: #{gin_forward.1} parent=11 // pred_check_branch
        %348 = sbr.rel (%p346) target = $region16
      $region15: #{gin_forward.1} parent=11 // pred_region
        _
      $region16: #{gin_forward.1} parent=11 // pred_fallthru
        _
      // Predicated region
      $region17: #{gin_forward.1} parent=11 // pred_check
        %p349 = pneg %p60
      $region18: #{gin_forward.1} parent=11 // pred_check_branch
        %351 = sbr.rel (%p349) target = $region20
      $region19: #{gin_forward.1} parent=11 // pred_region
        _
      $region20: #{gin_forward.1} parent=11 // pred_fallthru
        _
      // Predicated region
      $region21: #{gin_forward.1} parent=11 // pred_check
        %p352 = pneg %p81
      $region22: #{gin_forward.1} parent=11 // pred_check_branch
        %354 = sbr.rel (%p352) target = $region24
      $region23: #{gin_forward.1} parent=11 // pred_region
        _
      $region24: #{gin_forward.1} parent=11 // pred_fallthru
        _
      // Predicated region
      $region25: #{gin_forward.1} parent=11 // pred_check
        %p355 = pneg %p102
      $region26: #{gin_forward.1} parent=11 // pred_check_branch
        %357 = sbr.rel (%p355) target = $region28
      $region27: #{gin_forward.1} parent=11 // pred_region
        _
      $region28: #{gin_forward.1} parent=11 // pred_fallthru
        _
    $region12: #{gin_forward.1} parent=5 // pred_fallthru
      _
    %p358 = scmp.lt.s32.totalorder %s18, 3
    // Predicated region
    $region29: #{gin_forward.1} parent=5 // pred_check
      %p359 = pneg %p358
    $region30: #{gin_forward.1} parent=5 // pred_check_branch
      %361 = sbr.rel (%p359) target = $region32
    $region31: #{gin_forward.1} parent=5 // pred_region
      // Predicated region
      $region33: #{gin_forward.1} parent=31 // pred_check
        %p362 = pneg %p122
      $region34: #{gin_forward.1} parent=31 // pred_check_branch
        %364 = sbr.rel (%p362) target = $region36
      $region35: #{gin_forward.1} parent=31 // pred_region
        %p365 = scmp.lt.s32.totalorder %s18, 2
        %s366 = scalar_select %p365, %s18, 2
        %s367 = scalar_lea.vmem %s4, %s366
      $region36: #{gin_forward.1} parent=31 // pred_fallthru
        _
      // Predicated region
      $region37: #{gin_forward.1} parent=31 // pred_check
        %p368 = pneg %p148
      $region38: #{gin_forward.1} parent=31 // pred_check_branch
        %370 = sbr.rel (%p368) target = $region40
      $region39: #{gin_forward.1} parent=31 // pred_region
        %p371 = scmp.lt.s32.totalorder %s18, 2
        %s372 = scalar_select %p371, %s18, 2
        %s373 = scalar_lea.vmem %s5, %s372
      $region40: #{gin_forward.1} parent=31 // pred_fallthru
        _
      // Predicated region
      $region41: #{gin_forward.1} parent=31 // pred_check
        %p374 = pneg %p174
      $region42: #{gin_forward.1} parent=31 // pred_check_branch
        %376 = sbr.rel (%p374) target = $region44
      $region43: #{gin_forward.1} parent=31 // pred_region
        %p377 = scmp.lt.s32.totalorder %s18, 2
        %s378 = scalar_select %p377, %s18, 2
        %s379 = smul.addr %s378, 16
        %s380 = smul.addr %s379, 4
        %s381 = scalar_lea.vmem %s6, %s380
      $region44: #{gin_forward.1} parent=31 // pred_fallthru
        _
      // Predicated region
      $region45: #{gin_forward.1} parent=31 // pred_check
        %p382 = pneg %p200
      $region46: #{gin_forward.1} parent=31 // pred_check_branch
        %384 = sbr.rel (%p382) target = $region48
      $region47: #{gin_forward.1} parent=31 // pred_region
        %p385 = scmp.lt.s32.totalorder %s18, 2
        %s386 = scalar_select %p385, %s18, 2
        %s387 = scalar_lea.vmem %s7, %s386
      $region48: #{gin_forward.1} parent=31 // pred_fallthru
        _
      // Predicated region
      $region49: #{gin_forward.1} parent=31 // pred_check
        %p388 = pneg %p226
      $region50: #{gin_forward.1} parent=31 // pred_check_branch
        %390 = sbr.rel (%p388) target = $region52
      $region51: #{gin_forward.1} parent=31 // pred_region
        %p391 = scmp.lt.s32.totalorder %s18, 2
        %s392 = scalar_select %p391, %s18, 2
        %s393 = scalar_lea.vmem %s8, %s392
      $region52: #{gin_forward.1} parent=31 // pred_fallthru
        _
      // Predicated region
      $region53: #{gin_forward.1} parent=31 // pred_check
        %p394 = pneg %p252
      $region54: #{gin_forward.1} parent=31 // pred_check_branch
        %396 = sbr.rel (%p394) target = $region56
      $region55: #{gin_forward.1} parent=31 // pred_region
        %p397 = scmp.lt.s32.totalorder %s18, 2
        %s398 = scalar_select %p397, %s18, 2
        %s399 = scalar_lea.vmem %s9, %s398
      $region56: #{gin_forward.1} parent=31 // pred_fallthru
        _
      // Predicated region
      $region57: #{gin_forward.1} parent=31 // pred_check
        %p400 = pneg %p278
      $region58: #{gin_forward.1} parent=31 // pred_check_branch
        %402 = sbr.rel (%p400) target = $region60
      $region59: #{gin_forward.1} parent=31 // pred_region
        %p403 = scmp.lt.s32.totalorder %s18, 2
        %s404 = scalar_select %p403, %s18, 2
        %s405 = smul.addr %s404, 16
        %s406 = smul.addr %s405, 4
        %s407 = scalar_lea.vmem %s10, %s406
      $region60: #{gin_forward.1} parent=31 // pred_fallthru
        _
      // Predicated region
      $region61: #{gin_forward.1} parent=31 // pred_check
        %p408 = pneg %p304
      $region62: #{gin_forward.1} parent=31 // pred_check_branch
        %410 = sbr.rel (%p408) target = $region64
      $region63: #{gin_forward.1} parent=31 // pred_region
        %p411 = scmp.lt.s32.totalorder %s18, 2
        %s412 = scalar_select %p411, %s18, 2
        %s413 = scalar_lea.vmem %s11, %s412
      $region64: #{gin_forward.1} parent=31 // pred_fallthru
        _
    $region32: #{gin_forward.1} parent=5 // pred_fallthru
      _
    %p414 = scmp.le.s32.totalorder 1, %s18
    %p415 = scmp.lt.s32.totalorder %s18, 4
    %p416 = pnand %p414, %p415
    %p417 = pneg %p416
    // Predicated region
    $region65: #{gin_forward.1} parent=5 // pred_check
      _
    $region66: #{gin_forward.1} parent=5 // pred_check_branch
      %419 = sbr.rel (%p416) target = $region68
    $region67: #{gin_forward.1} parent=5 // pred_region
      %s420 = ssub.s32 %s18, 1
      %p421 = pneg %p39
      %p422 = pneg %p36
      %p423 = pneg %p60
      %p424 = pneg %p57
      %p425 = pneg %p81
      %p426 = pneg %p78
      %p427 = pneg %p102
      %p428 = pneg %p99
      %p429 = scmp.lt.s32.totalorder %s23, 2
      %s430 = scalar_select %p429, %s23, 2
      %s431 = scalar_lea.vmem %s4, %s430
      %p432 = pneg %p128
      %p433 = pneg %p125
      %p434 = scmp.lt.s32.totalorder %s23, 2
      %s435 = scalar_select %p434, %s23, 2
      %s436 = scalar_lea.vmem %s5, %s435
      %p437 = pneg %p154
      %p438 = pneg %p151
      %p439 = scmp.lt.s32.totalorder %s23, 2
      %s440 = scalar_select %p439, %s23, 2
      %s441 = smul.addr %s440, 16
      %s442 = smul.addr %s441, 4
      %s443 = scalar_lea.vmem %s6, %s442
      %p444 = pneg %p180
      %p445 = pneg %p177
      %p446 = scmp.lt.s32.totalorder %s23, 2
      %s447 = scalar_select %p446, %s23, 2
      %s448 = scalar_lea.vmem %s7, %s447
      %p449 = pneg %p206
      %p450 = pneg %p203
      %p451 = scmp.lt.s32.totalorder %s23, 2
      %s452 = scalar_select %p451, %s23, 2
      %s453 = scalar_lea.vmem %s8, %s452
      %p454 = pneg %p232
      %p455 = pneg %p229
      %p456 = scmp.lt.s32.totalorder %s23, 2
      %s457 = scalar_select %p456, %s23, 2
      %s458 = scalar_lea.vmem %s9, %s457
      %p459 = pneg %p258
      %p460 = pneg %p255
      %p461 = scmp.lt.s32.totalorder %s23, 2
      %s462 = scalar_select %p461, %s23, 2
      %s463 = smul.addr %s462, 16
      %s464 = smul.addr %s463, 4
      %s465 = scalar_lea.vmem %s10, %s464
      %p466 = pneg %p284
      %p467 = pneg %p281
      %p468 = scmp.lt.s32.totalorder %s23, 2
      %s469 = scalar_select %p468, %s23, 2
      %s470 = scalar_lea.vmem %s11, %s469
      %p471 = pneg %p310
      %p472 = pneg %p307
      %p473 = pneg %p331
      %p474 = pneg %p328
      %p475 = scmp.lt.s32.totalorder %s23, 2
      %s476 = scalar_select %p475, %s23, 2
      %s477 = scalar_lea.vmem %s4, %s476
      %p478 = scmp.lt.s32.totalorder %s23, 2
      %s479 = scalar_select %p478, %s23, 2
      %s480 = scalar_lea.vmem %s5, %s479
      %p481 = scmp.lt.s32.totalorder %s23, 2
      %s482 = scalar_select %p481, %s23, 2
      %s483 = smul.addr %s482, 16
      %s484 = smul.addr %s483, 4
      %s485 = scalar_lea.vmem %s6, %s484
      %p486 = scmp.lt.s32.totalorder %s23, 2
      %s487 = scalar_select %p486, %s23, 2
      %s488 = scalar_lea.vmem %s7, %s487
      %p489 = scmp.lt.s32.totalorder %s23, 2
      %s490 = scalar_select %p489, %s23, 2
      %s491 = scalar_lea.vmem %s8, %s490
      %p492 = scmp.lt.s32.totalorder %s23, 2
      %s493 = scalar_select %p492, %s23, 2
      %s494 = scalar_lea.vmem %s9, %s493
      %p495 = scmp.lt.s32.totalorder %s23, 2
      %s496 = scalar_select %p495, %s23, 2
      %s497 = smul.addr %s496, 16
      %s498 = smul.addr %s497, 4
      %s499 = scalar_lea.vmem %s10, %s498
      %p500 = scmp.lt.s32.totalorder %s23, 2
      %s501 = scalar_select %p500, %s23, 2
      %s502 = scalar_lea.vmem %s11, %s501
      %p504 = scmp.eq.s32.totalorder %s23, 0
      // Predicated region
      $region69: #{gin_forward.1} parent=67 // pred_check
        %p505 = pneg %p504
      $region70: #{gin_forward.1} parent=67 // pred_check_branch
        %507 = sbr.rel (%p505) target = $region72
      $region71: #{gin_forward.1} parent=67 // pred_region
        %v508 = vld [vmem:[%s0] sm:$0xff]
        %v509 = vld [vmem:[%s0 + $0x8] sm:$0xff]
        %v510 = vld [vmem:[%s0 + $0x10] sm:$0xff]
        %v511 = vld [vmem:[%s0 + $0x18] sm:$0xff]
        %v512 = vld [vmem:[%s0 + $0x20] sm:$0xff]
        %v513 = vld [vmem:[%s0 + $0x28] sm:$0xff]
        %v514 = vld [vmem:[%s0 + $0x30] sm:$0xff]
        %v515 = vld [vmem:[%s0 + $0x38] sm:$0xff]
        %v516 = vld [vmem:[%s0 + $0x40] sm:$0xff]
        %v517 = vld [vmem:[%s0 + $0x48] sm:$0xff]
        %v518 = vld [vmem:[%s0 + $0x50] sm:$0xff]
        %v519 = vld [vmem:[%s0 + $0x58] sm:$0xff]
        %v520 = vld [vmem:[%s0 + $0x60] sm:$0xff]
        %v521 = vld [vmem:[%s0 + $0x68] sm:$0xff]
        %v522 = vld [vmem:[%s0 + $0x70] sm:$0xff]
        %v523 = vld [vmem:[%s0 + $0x78] sm:$0xff]
        %524 = vst [vmem:[%s12] sm:$0xff] %v508
        %525 = vst [vmem:[%s12 + $0x8] sm:$0xff] %v509
        %526 = vst [vmem:[%s12 + $0x10] sm:$0xff] %v510
        %527 = vst [vmem:[%s12 + $0x18] sm:$0xff] %v511
        %528 = vst [vmem:[%s12 + $0x20] sm:$0xff] %v512
        %529 = vst [vmem:[%s12 + $0x28] sm:$0xff] %v513
        %530 = vst [vmem:[%s12 + $0x30] sm:$0xff] %v514
        %531 = vst [vmem:[%s12 + $0x38] sm:$0xff] %v515
        %532 = vst [vmem:[%s12 + $0x40] sm:$0xff] %v516
        %533 = vst [vmem:[%s12 + $0x48] sm:$0xff] %v517
        %534 = vst [vmem:[%s12 + $0x50] sm:$0xff] %v518
        %535 = vst [vmem:[%s12 + $0x58] sm:$0xff] %v519
        %536 = vst [vmem:[%s12 + $0x60] sm:$0xff] %v520
        %537 = vst [vmem:[%s12 + $0x68] sm:$0xff] %v521
        %538 = vst [vmem:[%s12 + $0x70] sm:$0xff] %v522
        %539 = vst [vmem:[%s12 + $0x78] sm:$0xff] %v523
        %v540 = vlaneseq
        %v541 = vand.u32 %v540, 127
        %v542 = vld [vmem:[%s1] sm:$0xff]
        %v543 = vld [vmem:[%s1 + $0x8] sm:$0xff]
        %v544 = vld [vmem:[%s1 + $0x10] sm:$0xff]
        %v545 = vld [vmem:[%s1 + $0x18] sm:$0xff]
        %v546 = vld [vmem:[%s1 + $0x20] sm:$0xff]
        %v547 = vld [vmem:[%s1 + $0x28] sm:$0xff]
        %v548 = vld [vmem:[%s1 + $0x30] sm:$0xff]
        %v549 = vld [vmem:[%s1 + $0x38] sm:$0xff]
        %v550 = vld [vmem:[%s1 + $0x40] sm:$0xff]
        %v551 = vld [vmem:[%s1 + $0x48] sm:$0xff]
        %v552 = vld [vmem:[%s1 + $0x50] sm:$0xff]
        %v553 = vld [vmem:[%s1 + $0x58] sm:$0xff]
        %v554 = vld [vmem:[%s1 + $0x60] sm:$0xff]
        %v555 = vld [vmem:[%s1 + $0x68] sm:$0xff]
        %v556 = vld [vmem:[%s1 + $0x70] sm:$0xff]
        %v557 = vld [vmem:[%s1 + $0x78] sm:$0xff]
        %558 = vset.pattern.permute.xlu0 0
        %559 = vperm.xlu0 %558, %v542
        %v560 = vpop.permute.xlu0 %559
        %561 = vset.pattern.permute.xlu0 0
        %562 = vperm.xlu0 %561, %v543
        %v563 = vpop.permute.xlu0 %562
        %564 = vset.pattern.permute.xlu0 0
        %565 = vperm.xlu0 %564, %v544
        %v566 = vpop.permute.xlu0 %565
        %567 = vset.pattern.permute.xlu0 0
        %568 = vperm.xlu0 %567, %v545
        %v569 = vpop.permute.xlu0 %568
        %570 = vset.pattern.permute.xlu0 0
        %571 = vperm.xlu0 %570, %v546
        %v572 = vpop.permute.xlu0 %571
        %573 = vset.pattern.permute.xlu0 0
        %574 = vperm.xlu0 %573, %v547
        %v575 = vpop.permute.xlu0 %574
        %576 = vset.pattern.permute.xlu0 0
        %577 = vperm.xlu0 %576, %v548
        %v578 = vpop.permute.xlu0 %577
        %579 = vset.pattern.permute.xlu0 0
        %580 = vperm.xlu0 %579, %v549
        %v581 = vpop.permute.xlu0 %580
        %582 = vset.pattern.permute.xlu0 0
        %583 = vperm.xlu0 %582, %v550
        %v584 = vpop.permute.xlu0 %583
        %585 = vset.pattern.permute.xlu0 0
        %586 = vperm.xlu0 %585, %v551
        %v587 = vpop.permute.xlu0 %586
        %588 = vset.pattern.permute.xlu0 0
        %589 = vperm.xlu0 %588, %v552
        %v590 = vpop.permute.xlu0 %589
        %591 = vset.pattern.permute.xlu0 0
        %592 = vperm.xlu0 %591, %v553
        %v593 = vpop.permute.xlu0 %592
        %594 = vset.pattern.permute.xlu0 0
        %595 = vperm.xlu0 %594, %v554
        %v596 = vpop.permute.xlu0 %595
        %597 = vset.pattern.permute.xlu0 0
        %598 = vperm.xlu0 %597, %v555
        %v599 = vpop.permute.xlu0 %598
        %600 = vset.pattern.permute.xlu0 0
        %601 = vperm.xlu0 %600, %v556
        %v602 = vpop.permute.xlu0 %601
        %603 = vset.pattern.permute.xlu0 0
        %604 = vperm.xlu0 %603, %v557
        %v605 = vpop.permute.xlu0 %604
        %vm606 = vcmp.eq.s32.totalorder %v560, %v541
        %vm607 = vcmp.eq.s32.totalorder %v563, %v541
        %vm608 = vcmp.eq.s32.totalorder %v566, %v541
        %vm609 = vcmp.eq.s32.totalorder %v569, %v541
        %vm610 = vcmp.eq.s32.totalorder %v572, %v541
        %vm611 = vcmp.eq.s32.totalorder %v575, %v541
        %vm612 = vcmp.eq.s32.totalorder %v578, %v541
        %vm613 = vcmp.eq.s32.totalorder %v581, %v541
        %vm614 = vcmp.eq.s32.totalorder %v584, %v541
        %vm615 = vcmp.eq.s32.totalorder %v587, %v541
        %vm616 = vcmp.eq.s32.totalorder %v590, %v541
        %vm617 = vcmp.eq.s32.totalorder %v593, %v541
        %vm618 = vcmp.eq.s32.totalorder %v596, %v541
        %vm619 = vcmp.eq.s32.totalorder %v599, %v541
        %vm620 = vcmp.eq.s32.totalorder %v602, %v541
        %vm621 = vcmp.eq.s32.totalorder %v605, %v541
        %v622 = vsel %vm606, 1, 0
        %v623 = vsel %vm607, 1, 0
        %v624 = vsel %vm608, 1, 0
        %v625 = vsel %vm609, 1, 0
        %v626 = vsel %vm610, 1, 0
        %v627 = vsel %vm611, 1, 0
        %v628 = vsel %vm612, 1, 0
        %v629 = vsel %vm613, 1, 0
        %v630 = vsel %vm614, 1, 0
        %v631 = vsel %vm615, 1, 0
        %v632 = vsel %vm616, 1, 0
        %v633 = vsel %vm617, 1, 0
        %v634 = vsel %vm618, 1, 0
        %v635 = vsel %vm619, 1, 0
        %v636 = vsel %vm620, 1, 0
        %v637 = vsel %vm621, 1, 0
        %v638 = vcvt.s32.f32 %v622
        %v639 = vcvt.s32.f32 %v623
        %v640 = vcvt.s32.f32 %v624
        %v641 = vcvt.s32.f32 %v625
        %v642 = vcvt.s32.f32 %v626
        %v643 = vcvt.s32.f32 %v627
        %v644 = vcvt.s32.f32 %v628
        %v645 = vcvt.s32.f32 %v629
        %v646 = vcvt.s32.f32 %v630
        %v647 = vcvt.s32.f32 %v631
        %v648 = vcvt.s32.f32 %v632
        %v649 = vcvt.s32.f32 %v633
        %v650 = vcvt.s32.f32 %v634
        %v651 = vcvt.s32.f32 %v635
        %v652 = vcvt.s32.f32 %v636
        %v653 = vcvt.s32.f32 %v637
        %v654 = vpack.c.bf16 %v639, %v638
        %v655 = vpack.c.bf16 %v641, %v640
        %v656 = vpack.c.bf16 %v643, %v642
        %v657 = vpack.c.bf16 %v645, %v644
        %v658 = vpack.c.bf16 %v647, %v646
        %v659 = vpack.c.bf16 %v649, %v648
        %v660 = vpack.c.bf16 %v651, %v650
        %v661 = vpack.c.bf16 %v653, %v652
        %662 = vst [vmem:[#allocation2] sm:$0xff] %v654
        %663 = vst [vmem:[#allocation2 + $0x8] sm:$0xff] %v655
        %664 = vst [vmem:[#allocation2 + $0x10] sm:$0xff] %v656
        %665 = vst [vmem:[#allocation2 + $0x18] sm:$0xff] %v657
        %666 = vst [vmem:[#allocation2 + $0x20] sm:$0xff] %v658
        %667 = vst [vmem:[#allocation2 + $0x28] sm:$0xff] %v659
        %668 = vst [vmem:[#allocation2 + $0x30] sm:$0xff] %v660
        %669 = vst [vmem:[#allocation2 + $0x38] sm:$0xff] %v661
        %v670 = vlaneseq
        %v671 = vshrl.u32 %v670, 7
        %v672 = vadd.s32 %v671, 8
        %v673 = vadd.s32 %v671, 16
        %v674 = vadd.s32 %v671, 24
        %v675 = vadd.s32 %v671, 32
        %v676 = vadd.s32 %v671, 40
        %v677 = vadd.s32 %v671, 48
        %v678 = vadd.s32 %v671, 56
        %v679 = vadd.s32 %v671, 64
        %v680 = vadd.s32 %v671, 72
        %v681 = vadd.s32 %v671, 80
        %v682 = vadd.s32 %v671, 88
        %v683 = vadd.s32 %v671, 96
        %v684 = vadd.s32 %v671, 104
        %v685 = vadd.s32 %v671, 112
        %v686 = vadd.s32 %v671, 120
        %v687 = vld [vmem:[%s2] sm:$0x1]
        %v688 = vlaneseq
        %v689 = vshrl.u32 %v688, 7
        %v690 = vsub.s32 0, %v689
        %v691 = vrot.slane %v687, %v690
        %vm692 = vcmp.eq.s32.totalorder %v691, %v671
        %vm693 = vcmp.eq.s32.totalorder %v691, %v672
        %vm694 = vcmp.eq.s32.totalorder %v691, %v673
        %vm695 = vcmp.eq.s32.totalorder %v691, %v674
        %vm696 = vcmp.eq.s32.totalorder %v691, %v675
        %vm697 = vcmp.eq.s32.totalorder %v691, %v676
        %vm698 = vcmp.eq.s32.totalorder %v691, %v677
        %vm699 = vcmp.eq.s32.totalorder %v691, %v678
        %vm700 = vcmp.eq.s32.totalorder %v691, %v679
        %vm701 = vcmp.eq.s32.totalorder %v691, %v680
        %vm702 = vcmp.eq.s32.totalorder %v691, %v681
        %vm703 = vcmp.eq.s32.totalorder %v691, %v682
        %vm704 = vcmp.eq.s32.totalorder %v691, %v683
        %vm705 = vcmp.eq.s32.totalorder %v691, %v684
        %vm706 = vcmp.eq.s32.totalorder %v691, %v685
        %vm707 = vcmp.eq.s32.totalorder %v691, %v686
        %v708 = vsel %vm692, 1, 0
        %v709 = vsel %vm693, 1, 0
        %v710 = vsel %vm694, 1, 0
        %v711 = vsel %vm695, 1, 0
        %v712 = vsel %vm696, 1, 0
        %v713 = vsel %vm697, 1, 0
        %v714 = vsel %vm698, 1, 0
        %v715 = vsel %vm699, 1, 0
        %v716 = vsel %vm700, 1, 0
        %v717 = vsel %vm701, 1, 0
        %v718 = vsel %vm702, 1, 0
        %v719 = vsel %vm703, 1, 0
        %v720 = vsel %vm704, 1, 0
        %v721 = vsel %vm705, 1, 0
        %v722 = vsel %vm706, 1, 0
        %v723 = vsel %vm707, 1, 0
        %v724 = vcvt.s32.f32 %v708
        %v725 = vcvt.s32.f32 %v709
        %v726 = vcvt.s32.f32 %v710
        %v727 = vcvt.s32.f32 %v711
        %v728 = vcvt.s32.f32 %v712
        %v729 = vcvt.s32.f32 %v713
        %v730 = vcvt.s32.f32 %v714
        %v731 = vcvt.s32.f32 %v715
        %v732 = vcvt.s32.f32 %v716
        %v733 = vcvt.s32.f32 %v717
        %v734 = vcvt.s32.f32 %v718
        %v735 = vcvt.s32.f32 %v719
        %v736 = vcvt.s32.f32 %v720
        %v737 = vcvt.s32.f32 %v721
        %v738 = vcvt.s32.f32 %v722
        %v739 = vcvt.s32.f32 %v723
        %v740 = vpack.c.bf16 %v725, %v724
        %v741 = vpack.c.bf16 %v727, %v726
        %v742 = vpack.c.bf16 %v729, %v728
        %v743 = vpack.c.bf16 %v731, %v730
        %v744 = vpack.c.bf16 %v733, %v732
        %v745 = vpack.c.bf16 %v735, %v734
        %v746 = vpack.c.bf16 %v737, %v736
        %v747 = vpack.c.bf16 %v739, %v738
        %748 = vst [vmem:[#allocation3] sm:$0xff] %v740
        %749 = vst [vmem:[#allocation3 + $0x8] sm:$0xff] %v741
        %750 = vst [vmem:[#allocation3 + $0x10] sm:$0xff] %v742
        %751 = vst [vmem:[#allocation3 + $0x18] sm:$0xff] %v743
        %752 = vst [vmem:[#allocation3 + $0x20] sm:$0xff] %v744
        %753 = vst [vmem:[#allocation3 + $0x28] sm:$0xff] %v745
        %754 = vst [vmem:[#allocation3 + $0x30] sm:$0xff] %v746
        %755 = vst [vmem:[#allocation3 + $0x38] sm:$0xff] %v747
      $region72: #{gin_forward.1} parent=67 // pred_fallthru
        _
      %v756 = vld [vmem:[%s12] sm:$0xff]
      %v757 = vld [vmem:[%s12 + $0x8] sm:$0xff]
      %v758 = vld [vmem:[%s12 + $0x10] sm:$0xff]
      %v759 = vld [vmem:[%s12 + $0x18] sm:$0xff]
      %v760 = vld [vmem:[%s12 + $0x20] sm:$0xff]
      %v761 = vld [vmem:[%s12 + $0x28] sm:$0xff]
      %v762 = vld [vmem:[%s12 + $0x30] sm:$0xff]
      %v763 = vld [vmem:[%s12 + $0x38] sm:$0xff]
      %v764 = vld [vmem:[%s12 + $0x40] sm:$0xff]
      %v765 = vld [vmem:[%s12 + $0x48] sm:$0xff]
      %v766 = vld [vmem:[%s12 + $0x50] sm:$0xff]
      %v767 = vld [vmem:[%s12 + $0x58] sm:$0xff]
      %v768 = vld [vmem:[%s12 + $0x60] sm:$0xff]
      %v769 = vld [vmem:[%s12 + $0x68] sm:$0xff]
      %v770 = vld [vmem:[%s12 + $0x70] sm:$0xff]
      %v771 = vld [vmem:[%s12 + $0x78] sm:$0xff]
      %v772 = vld [vmem:[%s477] sm:$0x1]
      %v774 = vlaneseq
      %v775 = vshrl.u32 %v774, 7
      %v776 = vsub.s32 0, %v775
      %v777 = vrot.slane %v772, %v776
      %v779 = vmul.f32 %v756, %v777
      %v780 = vmul.f32 %v757, %v777
      %v781 = vmul.f32 %v758, %v777
      %v782 = vmul.f32 %v759, %v777
      %v783 = vmul.f32 %v760, %v777
      %v784 = vmul.f32 %v761, %v777
      %v785 = vmul.f32 %v762, %v777
      %v786 = vmul.f32 %v763, %v777
      %v787 = vmul.f32 %v764, %v777
      %v788 = vmul.f32 %v765, %v777
      %v789 = vmul.f32 %v766, %v777
      %v790 = vmul.f32 %v767, %v777
      %v791 = vmul.f32 %v768, %v777
      %v792 = vmul.f32 %v769, %v777
      %v793 = vmul.f32 %v770, %v777
      %v794 = vmul.f32 %v771, %v777
      %v795 = vld [vmem:[%s480] sm:$0x1]
      %v797 = vlaneseq
      %v798 = vshrl.u32 %v797, 7
      %v799 = vsub.s32 0, %v798
      %v800 = vrot.slane %v795, %v799
      %v802 = vadd.f32 %v779, %v800
      %v803 = vadd.f32 %v780, %v800
      %v804 = vadd.f32 %v781, %v800
      %v805 = vadd.f32 %v782, %v800
      %v806 = vadd.f32 %v783, %v800
      %v807 = vadd.f32 %v784, %v800
      %v808 = vadd.f32 %v785, %v800
      %v809 = vadd.f32 %v786, %v800
      %v810 = vadd.f32 %v787, %v800
      %v811 = vadd.f32 %v788, %v800
      %v812 = vadd.f32 %v789, %v800
      %v813 = vadd.f32 %v790, %v800
      %v814 = vadd.f32 %v791, %v800
      %v815 = vadd.f32 %v792, %v800
      %v816 = vadd.f32 %v793, %v800
      %v817 = vadd.f32 %v794, %v800
      %v818 = vpack.c.bf16 %v803, %v802
      %v819 = vpack.c.bf16 %v805, %v804
      %v820 = vpack.c.bf16 %v807, %v806
      %v821 = vpack.c.bf16 %v809, %v808
      %v822 = vpack.c.bf16 %v811, %v810
      %v823 = vpack.c.bf16 %v813, %v812
      %v824 = vpack.c.bf16 %v815, %v814
      %v825 = vpack.c.bf16 %v817, %v816
      %v826 = vld [vmem:[#allocation2] sm:$0xff]
      %v827 = vld [vmem:[#allocation2 + $0x8] sm:$0xff]
      %v828 = vld [vmem:[#allocation2 + $0x10] sm:$0xff]
      %v829 = vld [vmem:[#allocation2 + $0x18] sm:$0xff]
      %v830 = vld [vmem:[#allocation2 + $0x20] sm:$0xff]
      %v831 = vld [vmem:[#allocation2 + $0x28] sm:$0xff]
      %v832 = vld [vmem:[#allocation2 + $0x30] sm:$0xff]
      %v833 = vld [vmem:[#allocation2 + $0x38] sm:$0xff]
      %v834 = vld [vmem:[%s3] sm:$0xff]
      %v835 = vld [vmem:[%s3 + $0x8] sm:$0xff]
      %v836 = vld [vmem:[%s3 + $0x10] sm:$0xff]
      %v837 = vld [vmem:[%s3 + $0x18] sm:$0xff]
      %v838 = vld [vmem:[%s3 + $0x20] sm:$0xff]
      %v839 = vld [vmem:[%s3 + $0x28] sm:$0xff]
      %v840 = vld [vmem:[%s3 + $0x30] sm:$0xff]
      %v841 = vld [vmem:[%s3 + $0x38] sm:$0xff]
      %v842 = vld [vmem:[%s3 + $0x40] sm:$0xff]
      %v843 = vld [vmem:[%s3 + $0x48] sm:$0xff]
      %v844 = vld [vmem:[%s3 + $0x50] sm:$0xff]
      %v845 = vld [vmem:[%s3 + $0x58] sm:$0xff]
      %v846 = vld [vmem:[%s3 + $0x60] sm:$0xff]
      %v847 = vld [vmem:[%s3 + $0x68] sm:$0xff]
      %v848 = vld [vmem:[%s3 + $0x70] sm:$0xff]
      %v849 = vld [vmem:[%s3 + $0x78] sm:$0xff]
      %850 = vmatprep.subr.bf16.mxu0 0
      %851 = vmatpush1.bf16.msra.mxu0 %v818
      %852 = vmatprep.subr.bf16.mxu0 0
      %853 = vmatpush1.bf16.msra.mxu0 %v819
      %854 = vmatprep.subr.bf16.mxu0 0
      %855 = vmatpush1.bf16.msra.mxu0 %v820
      %856 = vmatprep.subr.bf16.mxu0 0
      %857 = vmatpush1.bf16.msra.mxu0 %v821
      %858 = vmatprep.subr.bf16.mxu0 0
      %859 = vmatpush1.bf16.msra.mxu0 %v822
      %860 = vmatprep.subr.bf16.mxu0 0
      %861 = vmatpush1.bf16.msra.mxu0 %v823
      %862 = vmatprep.subr.bf16.mxu0 0
      %863 = vmatpush1.bf16.msra.mxu0 %v824
      %864 = vmatprep.subr.bf16.mxu0 0
      %865 = vmatpush1.bf16.msra.mxu0 %v825
      %866 = vmatprep.subr.bf16.mxu0 0
      %867 = vmatpush1.bf16.msra.mxu0 0
      %868 = vmatprep.subr.bf16.mxu0 0
      %869 = vmatpush1.bf16.msra.mxu0 0
      %870 = vmatprep.subr.bf16.mxu0 0
      %871 = vmatpush1.bf16.msra.mxu0 0
      %872 = vmatprep.subr.bf16.mxu0 0
      %873 = vmatpush1.bf16.msra.mxu0 0
      %874 = vmatprep.subr.bf16.mxu0 0
      %875 = vmatpush1.bf16.msra.mxu0 0
      %876 = vmatprep.subr.bf16.mxu0 0
      %877 = vmatpush1.bf16.msra.mxu0 0
      %878 = vmatprep.subr.bf16.mxu0 0
      %879 = vmatpush1.bf16.msra.mxu0 0
      %880 = vmatprep.subr.bf16.mxu0 0
      %881 = vmatpush1.bf16.msra.mxu0 0
      %882 = vmatprep.mubr.bf16.mxu0 0
      %883 = vmatmul.mubr.bf16.gmra.mrb[0].mxu0 %v826
      %v884 = vpop.f32.mrb[0].mxu0
      %v885 = vadd.f32 %v834, %v884
      %v886 = vpop.f32.mrb[0].mxu0
      %v887 = vpop.f32.mrb[0].mxu0
      %v888 = vadd.f32 %v835, %v887
      %v889 = vpop.f32.mrb[0].mxu0
      %890 = vmatprep.mubr.bf16.mxu0 0
      %891 = vmatmul.mubr.bf16.gmra.mrb[0].mxu0 %v827
      %v892 = vpop.f32.mrb[0].mxu0
      %v893 = vadd.f32 %v836, %v892
      %v894 = vpop.f32.mrb[0].mxu0
      %v895 = vpop.f32.mrb[0].mxu0
      %v896 = vadd.f32 %v837, %v895
      %v897 = vpop.f32.mrb[0].mxu0
      %898 = vmatprep.mubr.bf16.mxu0 0
      %899 = vmatmul.mubr.bf16.gmra.mrb[0].mxu0 %v828
      %v900 = vpop.f32.mrb[0].mxu0
      %v901 = vadd.f32 %v838, %v900
      %v902 = vpop.f32.mrb[0].mxu0
      %v903 = vpop.f32.mrb[0].mxu0
      %v904 = vadd.f32 %v839, %v903
      %v905 = vpop.f32.mrb[0].mxu0
      %906 = vmatprep.mubr.bf16.mxu0 0
      %907 = vmatmul.mubr.bf16.gmra.mrb[0].mxu0 %v829
      %v908 = vpop.f32.mrb[0].mxu0
      %v909 = vadd.f32 %v840, %v908
      %v910 = vpop.f32.mrb[0].mxu0
      %v911 = vpop.f32.mrb[0].mxu0
      %v912 = vadd.f32 %v841, %v911
      %v913 = vpop.f32.mrb[0].mxu0
      %914 = vmatprep.mubr.bf16.mxu0 0
      %915 = vmatmul.mubr.bf16.gmra.mrb[0].mxu0 %v830
      %v916 = vpop.f32.mrb[0].mxu0
      %v917 = vadd.f32 %v842, %v916
      %v918 = vpop.f32.mrb[0].mxu0
      %v919 = vpop.f32.mrb[0].mxu0
      %v920 = vadd.f32 %v843, %v919
      %v921 = vpop.f32.mrb[0].mxu0
      %922 = vmatprep.mubr.bf16.mxu0 0
      %923 = vmatmul.mubr.bf16.gmra.mrb[0].mxu0 %v831
      %v924 = vpop.f32.mrb[0].mxu0
      %v925 = vadd.f32 %v844, %v924
      %v926 = vpop.f32.mrb[0].mxu0
      %v927 = vpop.f32.mrb[0].mxu0
      %v928 = vadd.f32 %v845, %v927
      %v929 = vpop.f32.mrb[0].mxu0
      %930 = vmatprep.mubr.bf16.mxu0 0
      %931 = vmatmul.mubr.bf16.gmra.mrb[0].mxu0 %v832
      %v932 = vpop.f32.mrb[0].mxu0
      %v933 = vadd.f32 %v846, %v932
      %v934 = vpop.f32.mrb[0].mxu0
      %v935 = vpop.f32.mrb[0].mxu0
      %v936 = vadd.f32 %v847, %v935
      %v937 = vpop.f32.mrb[0].mxu0
      %938 = vmatprep.mubr.bf16.mxu0 0
      %939 = vmatmul.mubr.bf16.gmra.mrb[0].mxu0 %v833
      %v940 = vpop.f32.mrb[0].mxu0
      %v941 = vadd.f32 %v848, %v940
      %v942 = vpop.f32.mrb[0].mxu0
      %v943 = vpop.f32.mrb[0].mxu0
      %v944 = vadd.f32 %v849, %v943
      %v945 = vpop.f32.mrb[0].mxu0
      %946 = vdwg.mxu0
      %v947 = vmax.f32 %v885, 0.0
      %v948 = vmax.f32 %v888, 0.0
      %v949 = vmax.f32 %v893, 0.0
      %v950 = vmax.f32 %v896, 0.0
      %v951 = vmax.f32 %v901, 0.0
      %v952 = vmax.f32 %v904, 0.0
      %v953 = vmax.f32 %v909, 0.0
      %v954 = vmax.f32 %v912, 0.0
      %v955 = vmax.f32 %v917, 0.0
      %v956 = vmax.f32 %v920, 0.0
      %v957 = vmax.f32 %v925, 0.0
      %v958 = vmax.f32 %v928, 0.0
      %v959 = vmax.f32 %v933, 0.0
      %v960 = vmax.f32 %v936, 0.0
      %v961 = vmax.f32 %v941, 0.0
      %v962 = vmax.f32 %v944, 0.0
      %v963 = vld [vmem:[#allocation3] sm:$0xff]
      %v964 = vld [vmem:[#allocation3 + $0x8] sm:$0xff]
      %v965 = vld [vmem:[#allocation3 + $0x10] sm:$0xff]
      %v966 = vld [vmem:[#allocation3 + $0x18] sm:$0xff]
      %v967 = vld [vmem:[#allocation3 + $0x20] sm:$0xff]
      %v968 = vld [vmem:[#allocation3 + $0x28] sm:$0xff]
      %v969 = vld [vmem:[#allocation3 + $0x30] sm:$0xff]
      %v970 = vld [vmem:[#allocation3 + $0x38] sm:$0xff]
      %v971 = vpack.c.bf16 %v948, %v947
      %v972 = vpack.c.bf16 %v950, %v949
      %v973 = vpack.c.bf16 %v952, %v951
      %v974 = vpack.c.bf16 %v954, %v953
      %v975 = vpack.c.bf16 %v956, %v955
      %v976 = vpack.c.bf16 %v958, %v957
      %v977 = vpack.c.bf16 %v960, %v959
      %v978 = vpack.c.bf16 %v962, %v961
      %979 = vmatprep.subr.bf16.mxu0 0
      %980 = vmatpush1.bf16.msra.mxu0 %v971
      %981 = vmatprep.subr.bf16.mxu0 0
      %982 = vmatpush1.bf16.msra.mxu0 %v972
      %983 = vmatprep.subr.bf16.mxu0 0
      %984 = vmatpush1.bf16.msra.mxu0 %v973
      %985 = vmatprep.subr.bf16.mxu0 0
      %986 = vmatpush1.bf16.msra.mxu0 %v974
      %987 = vmatprep.subr.bf16.mxu0 0
      %988 = vmatpush1.bf16.msra.mxu0 %v975
      %989 = vmatprep.subr.bf16.mxu0 0
      %990 = vmatpush1.bf16.msra.mxu0 %v976
      %991 = vmatprep.subr.bf16.mxu0 0
      %992 = vmatpush1.bf16.msra.mxu0 %v977
      %993 = vmatprep.subr.bf16.mxu0 0
      %994 = vmatpush1.bf16.msra.mxu0 %v978
      %995 = vmatprep.subr.bf16.mxu0 0
      %996 = vmatpush1.bf16.msra.mxu0 0
      %997 = vmatprep.subr.bf16.mxu0 0
      %998 = vmatpush1.bf16.msra.mxu0 0
      %999 = vmatprep.subr.bf16.mxu0 0
      %1000 = vmatpush1.bf16.msra.mxu0 0
      %1001 = vmatprep.subr.bf16.mxu0 0
      %1002 = vmatpush1.bf16.msra.mxu0 0
      %1003 = vmatprep.subr.bf16.mxu0 0
      %1004 = vmatpush1.bf16.msra.mxu0 0
      %1005 = vmatprep.subr.bf16.mxu0 0
      %1006 = vmatpush1.bf16.msra.mxu0 0
      %1007 = vmatprep.subr.bf16.mxu0 0
      %1008 = vmatpush1.bf16.msra.mxu0 0
      %1009 = vmatprep.subr.bf16.mxu0 0
      %1010 = vmatpush1.bf16.msra.mxu0 0
      %1011 = vmatprep.mubr.bf16.mxu0 0
      %1012 = vmatmul.mubr.bf16.gmra.mrb[0].mxu0 %v963
      %v1013 = vpop.f32.mrb[0].mxu0
      %v1014 = vadd.f32 0.0, %v1013
      %v1015 = vpop.f32.mrb[0].mxu0
      %v1016 = vpop.f32.mrb[0].mxu0
      %v1017 = vadd.f32 0.0, %v1016
      %v1018 = vpop.f32.mrb[0].mxu0
      %1019 = vmatprep.mubr.bf16.mxu0 0
      %1020 = vmatmul.mubr.bf16.gmra.mrb[0].mxu0 %v964
      %v1021 = vpop.f32.mrb[0].mxu0
      %v1022 = vadd.f32 0.0, %v1021
      %v1023 = vpop.f32.mrb[0].mxu0
      %v1024 = vpop.f32.mrb[0].mxu0
      %v1025 = vadd.f32 0.0, %v1024
      %v1026 = vpop.f32.mrb[0].mxu0
      %1027 = vmatprep.mubr.bf16.mxu0 0
      %1028 = vmatmul.mubr.bf16.gmra.mrb[0].mxu0 %v965
      %v1029 = vpop.f32.mrb[0].mxu0
      %v1030 = vadd.f32 0.0, %v1029
      %v1031 = vpop.f32.mrb[0].mxu0
      %v1032 = vpop.f32.mrb[0].mxu0
      %v1033 = vadd.f32 0.0, %v1032
      %v1034 = vpop.f32.mrb[0].mxu0
      %1035 = vmatprep.mubr.bf16.mxu0 0
      %1036 = vmatmul.mubr.bf16.gmra.mrb[0].mxu0 %v966
      %v1037 = vpop.f32.mrb[0].mxu0
      %v1038 = vadd.f32 0.0, %v1037
      %v1039 = vpop.f32.mrb[0].mxu0
      %v1040 = vpop.f32.mrb[0].mxu0
      %v1041 = vadd.f32 0.0, %v1040
      %v1042 = vpop.f32.mrb[0].mxu0
      %1043 = vmatprep.mubr.bf16.mxu0 0
      %1044 = vmatmul.mubr.bf16.gmra.mrb[0].mxu0 %v967
      %v1045 = vpop.f32.mrb[0].mxu0
      %v1046 = vadd.f32 0.0, %v1045
      %v1047 = vpop.f32.mrb[0].mxu0
      %v1048 = vpop.f32.mrb[0].mxu0
      %v1049 = vadd.f32 0.0, %v1048
      %v1050 = vpop.f32.mrb[0].mxu0
      %1051 = vmatprep.mubr.bf16.mxu0 0
      %1052 = vmatmul.mubr.bf16.gmra.mrb[0].mxu0 %v968
      %v1053 = vpop.f32.mrb[0].mxu0
      %v1054 = vadd.f32 0.0, %v1053
      %v1055 = vpop.f32.mrb[0].mxu0
      %v1056 = vpop.f32.mrb[0].mxu0
      %v1057 = vadd.f32 0.0, %v1056
      %v1058 = vpop.f32.mrb[0].mxu0
      %1059 = vmatprep.mubr.bf16.mxu0 0
      %1060 = vmatmul.mubr.bf16.gmra.mrb[0].mxu0 %v969
      %v1061 = vpop.f32.mrb[0].mxu0
      %v1062 = vadd.f32 0.0, %v1061
      %v1063 = vpop.f32.mrb[0].mxu0
      %v1064 = vpop.f32.mrb[0].mxu0
      %v1065 = vadd.f32 0.0, %v1064
      %v1066 = vpop.f32.mrb[0].mxu0
      %1067 = vmatprep.mubr.bf16.mxu0 0
      %1068 = vmatmul.mubr.bf16.gmra.mrb[0].mxu0 %v970
      %v1069 = vpop.f32.mrb[0].mxu0
      %v1070 = vadd.f32 0.0, %v1069
      %v1071 = vpop.f32.mrb[0].mxu0
      %v1072 = vpop.f32.mrb[0].mxu0
      %v1073 = vadd.f32 0.0, %v1072
      %v1074 = vpop.f32.mrb[0].mxu0
      %1075 = vdwg.mxu0
      %v1076 = vadd.f32 %v802, %v1014
      %v1077 = vadd.f32 %v803, %v1017
      %v1078 = vadd.f32 %v804, %v1022
      %v1079 = vadd.f32 %v805, %v1025
      %v1080 = vadd.f32 %v806, %v1030
      %v1081 = vadd.f32 %v807, %v1033
      %v1082 = vadd.f32 %v808, %v1038
      %v1083 = vadd.f32 %v809, %v1041
      %v1084 = vadd.f32 %v810, %v1046
      %v1085 = vadd.f32 %v811, %v1049
      %v1086 = vadd.f32 %v812, %v1054
      %v1087 = vadd.f32 %v813, %v1057
      %v1088 = vadd.f32 %v814, %v1062
      %v1089 = vadd.f32 %v815, %v1065
      %v1090 = vadd.f32 %v816, %v1070
      %v1091 = vadd.f32 %v817, %v1073
      %v1092 = vpack.c.bf16 %v1077, %v1076
      %v1093 = vpack.c.bf16 %v1079, %v1078
      %v1094 = vpack.c.bf16 %v1081, %v1080
      %v1095 = vpack.c.bf16 %v1083, %v1082
      %v1096 = vpack.c.bf16 %v1085, %v1084
      %v1097 = vpack.c.bf16 %v1087, %v1086
      %v1098 = vpack.c.bf16 %v1089, %v1088
      %v1099 = vpack.c.bf16 %v1091, %v1090
      %v1100 = vld [vmem:[%s485] sm:$0xf]
      %v1101 = vld [vmem:[%s485 + $0x4] sm:$0xf]
      %v1102 = vld [vmem:[%s485 + $0x8] sm:$0xf]
      %v1103 = vld [vmem:[%s485 + $0xc] sm:$0xf]
      %v1104 = vld [vmem:[%s485 + $0x10] sm:$0xf]
      %v1105 = vld [vmem:[%s485 + $0x14] sm:$0xf]
      %v1106 = vld [vmem:[%s485 + $0x18] sm:$0xf]
      %v1107 = vld [vmem:[%s485 + $0x1c] sm:$0xf]
      %v1108 = vld [vmem:[%s485 + $0x20] sm:$0xf]
      %v1109 = vld [vmem:[%s485 + $0x24] sm:$0xf]
      %v1110 = vld [vmem:[%s485 + $0x28] sm:$0xf]
      %v1111 = vld [vmem:[%s485 + $0x2c] sm:$0xf]
      %v1112 = vld [vmem:[%s485 + $0x30] sm:$0xf]
      %v1113 = vld [vmem:[%s485 + $0x34] sm:$0xf]
      %v1114 = vld [vmem:[%s485 + $0x38] sm:$0xf]
      %v1115 = vld [vmem:[%s485 + $0x3c] sm:$0xf]
      %v1116 = vld [vmem:[%s488] sm:$0x1]
      %v1118 = vlaneseq
      %v1119 = vshrl.u32 %v1118, 7
      %v1120 = vsub.s32 0, %v1119
      %v1121 = vrot.slane %v1116, %v1120
      %v1139 = vunpack.c.l.b16 %v1100
      %v1140 = vunpack.c.l.b16 %v1101
      %v1141 = vunpack.c.l.b16 %v1102
      %v1142 = vunpack.c.l.b16 %v1103
      %v1143 = vunpack.c.l.b16 %v1104
      %v1144 = vunpack.c.l.b16 %v1105
      %v1145 = vunpack.c.l.b16 %v1106
      %v1146 = vunpack.c.l.b16 %v1107
      %v1147 = vunpack.c.l.b16 %v1108
      %v1148 = vunpack.c.l.b16 %v1109
      %v1149 = vunpack.c.l.b16 %v1110
      %v1150 = vunpack.c.l.b16 %v1111
      %v1151 = vunpack.c.l.b16 %v1112
      %v1152 = vunpack.c.l.b16 %v1113
      %v1153 = vunpack.c.l.b16 %v1114
      %v1154 = vunpack.c.l.b16 %v1115
      %v1155 = vpack.c.b16 %v1140, %v1139
      %v1156 = vpack.c.b16 %v1142, %v1141
      %v1157 = vpack.c.b16 %v1144, %v1143
      %v1158 = vpack.c.b16 %v1146, %v1145
      %v1159 = vpack.c.b16 %v1148, %v1147
      %v1160 = vpack.c.b16 %v1150, %v1149
      %v1161 = vpack.c.b16 %v1152, %v1151
      %v1162 = vpack.c.b16 %v1154, %v1153
      %1171 = vmatprep.subr.bf16.mxu0 0
      %1172 = vmatpush1.bf16.msra.mxu0 %v1155
      %1173 = vmatprep.subr.bf16.mxu0 0
      %1174 = vmatpush1.bf16.msra.mxu0 %v1156
      %1175 = vmatprep.subr.bf16.mxu0 0
      %1176 = vmatpush1.bf16.msra.mxu0 %v1157
      %1177 = vmatprep.subr.bf16.mxu0 0
      %1178 = vmatpush1.bf16.msra.mxu0 %v1158
      %1179 = vmatprep.subr.bf16.mxu0 0
      %1180 = vmatpush1.bf16.msra.mxu0 %v1159
      %1181 = vmatprep.subr.bf16.mxu0 0
      %1182 = vmatpush1.bf16.msra.mxu0 %v1160
      %1183 = vmatprep.subr.bf16.mxu0 0
      %1184 = vmatpush1.bf16.msra.mxu0 %v1161
      %1185 = vmatprep.subr.bf16.mxu0 0
      %1186 = vmatpush1.bf16.msra.mxu0 %v1162
      %1187 = vmatprep.subr.bf16.mxu0 0
      %1188 = vmatpush1.bf16.msra.mxu0 0
      %1189 = vmatprep.subr.bf16.mxu0 0
      %1190 = vmatpush1.bf16.msra.mxu0 0
      %1191 = vmatprep.subr.bf16.mxu0 0
      %1192 = vmatpush1.bf16.msra.mxu0 0
      %1193 = vmatprep.subr.bf16.mxu0 0
      %1194 = vmatpush1.bf16.msra.mxu0 0
      %1195 = vmatprep.subr.bf16.mxu0 0
      %1196 = vmatpush1.bf16.msra.mxu0 0
      %1197 = vmatprep.subr.bf16.mxu0 0
      %1198 = vmatpush1.bf16.msra.mxu0 0
      %1199 = vmatprep.subr.bf16.mxu0 0
      %1200 = vmatpush1.bf16.msra.mxu0 0
      %1201 = vmatprep.subr.bf16.mxu0 0
      %1202 = vmatpush1.bf16.msra.mxu0 0
      %1203 = vmatprep.mubr.bf16.mxu0 0
      %1204 = vmatmul.mubr.bf16.gmra.mrb[0].mxu0 %v1092
      %v1205 = vpop.f32.mrb[0].mxu0
      %v1206 = vadd.f32 %v1121, %v1205
      %v1207 = vpop.f32.mrb[0].mxu0
      %v1208 = vpop.f32.mrb[0].mxu0
      %v1209 = vadd.f32 %v1121, %v1208
      %v1210 = vpop.f32.mrb[0].mxu0
      %1211 = vmatprep.mubr.bf16.mxu0 0
      %1212 = vmatmul.mubr.bf16.gmra.mrb[0].mxu0 %v1093
      %v1213 = vpop.f32.mrb[0].mxu0
      %v1214 = vadd.f32 %v1121, %v1213
      %v1215 = vpop.f32.mrb[0].mxu0
      %v1216 = vpop.f32.mrb[0].mxu0
      %v1217 = vadd.f32 %v1121, %v1216
      %v1218 = vpop.f32.mrb[0].mxu0
      %1219 = vmatprep.mubr.bf16.mxu0 0
      %1220 = vmatmul.mubr.bf16.gmra.mrb[0].mxu0 %v1094
      %v1221 = vpop.f32.mrb[0].mxu0
      %v1222 = vadd.f32 %v1121, %v1221
      %v1223 = vpop.f32.mrb[0].mxu0
      %v1224 = vpop.f32.mrb[0].mxu0
      %v1225 = vadd.f32 %v1121, %v1224
      %v1226 = vpop.f32.mrb[0].mxu0
      %1227 = vmatprep.mubr.bf16.mxu0 0
      %1228 = vmatmul.mubr.bf16.gmra.mrb[0].mxu0 %v1095
      %v1229 = vpop.f32.mrb[0].mxu0
      %v1230 = vadd.f32 %v1121, %v1229
      %v1231 = vpop.f32.mrb[0].mxu0
      %v1232 = vpop.f32.mrb[0].mxu0
      %v1233 = vadd.f32 %v1121, %v1232
      %v1234 = vpop.f32.mrb[0].mxu0
      %1235 = vmatprep.mubr.bf16.mxu0 0
      %1236 = vmatmul.mubr.bf16.gmra.mrb[0].mxu0 %v1096
      %v1237 = vpop.f32.mrb[0].mxu0
      %v1238 = vadd.f32 %v1121, %v1237
      %v1239 = vpop.f32.mrb[0].mxu0
      %v1240 = vpop.f32.mrb[0].mxu0
      %v1241 = vadd.f32 %v1121, %v1240
      %v1242 = vpop.f32.mrb[0].mxu0
      %1243 = vmatprep.mubr.bf16.mxu0 0
      %1244 = vmatmul.mubr.bf16.gmra.mrb[0].mxu0 %v1097
      %v1245 = vpop.f32.mrb[0].mxu0
      %v1246 = vadd.f32 %v1121, %v1245
      %v1247 = vpop.f32.mrb[0].mxu0
      %v1248 = vpop.f32.mrb[0].mxu0
      %v1249 = vadd.f32 %v1121, %v1248
      %v1250 = vpop.f32.mrb[0].mxu0
      %1251 = vmatprep.mubr.bf16.mxu0 0
      %1252 = vmatmul.mubr.bf16.gmra.mrb[0].mxu0 %v1098
      %v1253 = vpop.f32.mrb[0].mxu0
      %v1254 = vadd.f32 %v1121, %v1253
      %v1255 = vpop.f32.mrb[0].mxu0
      %v1256 = vpop.f32.mrb[0].mxu0
      %v1257 = vadd.f32 %v1121, %v1256
      %v1258 = vpop.f32.mrb[0].mxu0
      %1259 = vmatprep.mubr.bf16.mxu0 0
      %1260 = vmatmul.mubr.bf16.gmra.mrb[0].mxu0 %v1099
      %v1261 = vpop.f32.mrb[0].mxu0
      %v1262 = vadd.f32 %v1121, %v1261
      %v1263 = vpop.f32.mrb[0].mxu0
      %v1264 = vpop.f32.mrb[0].mxu0
      %v1265 = vadd.f32 %v1121, %v1264
      %v1266 = vpop.f32.mrb[0].mxu0
      %1267 = vdwg.mxu0
      %v1268 = vld [vmem:[%s491] sm:$0x1]
      %v1270 = vlaneseq
      %v1271 = vshrl.u32 %v1270, 7
      %v1272 = vsub.s32 0, %v1271
      %v1273 = vrot.slane %v1268, %v1272
      %v1275 = vmul.f32 %v1206, %v1273
      %v1276 = vmul.f32 %v1209, %v1273
      %v1277 = vmul.f32 %v1214, %v1273
      %v1278 = vmul.f32 %v1217, %v1273
      %v1279 = vmul.f32 %v1222, %v1273
      %v1280 = vmul.f32 %v1225, %v1273
      %v1281 = vmul.f32 %v1230, %v1273
      %v1282 = vmul.f32 %v1233, %v1273
      %v1283 = vmul.f32 %v1238, %v1273
      %v1284 = vmul.f32 %v1241, %v1273
      %v1285 = vmul.f32 %v1246, %v1273
      %v1286 = vmul.f32 %v1249, %v1273
      %v1287 = vmul.f32 %v1254, %v1273
      %v1288 = vmul.f32 %v1257, %v1273
      %v1289 = vmul.f32 %v1262, %v1273
      %v1290 = vmul.f32 %v1265, %v1273
      %v1291 = vld [vmem:[%s494] sm:$0x1]
      %v1293 = vlaneseq
      %v1294 = vshrl.u32 %v1293, 7
      %v1295 = vsub.s32 0, %v1294
      %v1296 = vrot.slane %v1291, %v1295
      %v1298 = vadd.f32 %v1275, %v1296
      %v1299 = vadd.f32 %v1276, %v1296
      %v1300 = vadd.f32 %v1277, %v1296
      %v1301 = vadd.f32 %v1278, %v1296
      %v1302 = vadd.f32 %v1279, %v1296
      %v1303 = vadd.f32 %v1280, %v1296
      %v1304 = vadd.f32 %v1281, %v1296
      %v1305 = vadd.f32 %v1282, %v1296
      %v1306 = vadd.f32 %v1283, %v1296
      %v1307 = vadd.f32 %v1284, %v1296
      %v1308 = vadd.f32 %v1285, %v1296
      %v1309 = vadd.f32 %v1286, %v1296
      %v1310 = vadd.f32 %v1287, %v1296
      %v1311 = vadd.f32 %v1288, %v1296
      %v1312 = vadd.f32 %v1289, %v1296
      %v1313 = vadd.f32 %v1290, %v1296
      %v1314 = vmax.f32 %v1298, 0.0
      %v1315 = vmax.f32 %v1299, 0.0
      %v1316 = vmax.f32 %v1300, 0.0
      %v1317 = vmax.f32 %v1301, 0.0
      %v1318 = vmax.f32 %v1302, 0.0
      %v1319 = vmax.f32 %v1303, 0.0
      %v1320 = vmax.f32 %v1304, 0.0
      %v1321 = vmax.f32 %v1305, 0.0
      %v1322 = vmax.f32 %v1306, 0.0
      %v1323 = vmax.f32 %v1307, 0.0
      %v1324 = vmax.f32 %v1308, 0.0
      %v1325 = vmax.f32 %v1309, 0.0
      %v1326 = vmax.f32 %v1310, 0.0
      %v1327 = vmax.f32 %v1311, 0.0
      %v1328 = vmax.f32 %v1312, 0.0
      %v1329 = vmax.f32 %v1313, 0.0
      %v1330 = vpack.c.bf16 %v1315, %v1314
      %v1331 = vpack.c.bf16 %v1317, %v1316
      %v1332 = vpack.c.bf16 %v1319, %v1318
      %v1333 = vpack.c.bf16 %v1321, %v1320
      %v1334 = vpack.c.bf16 %v1323, %v1322
      %v1335 = vpack.c.bf16 %v1325, %v1324
      %v1336 = vpack.c.bf16 %v1327, %v1326
      %v1337 = vpack.c.bf16 %v1329, %v1328
      %v1338 = vld [vmem:[%s499] sm:$0xf]
      %v1339 = vld [vmem:[%s499 + $0x4] sm:$0xf]
      %v1340 = vld [vmem:[%s499 + $0x8] sm:$0xf]
      %v1341 = vld [vmem:[%s499 + $0xc] sm:$0xf]
      %v1342 = vld [vmem:[%s499 + $0x10] sm:$0xf]
      %v1343 = vld [vmem:[%s499 + $0x14] sm:$0xf]
      %v1344 = vld [vmem:[%s499 + $0x18] sm:$0xf]
      %v1345 = vld [vmem:[%s499 + $0x1c] sm:$0xf]
      %v1346 = vld [vmem:[%s499 + $0x20] sm:$0xf]
      %v1347 = vld [vmem:[%s499 + $0x24] sm:$0xf]
      %v1348 = vld [vmem:[%s499 + $0x28] sm:$0xf]
      %v1349 = vld [vmem:[%s499 + $0x2c] sm:$0xf]
      %v1350 = vld [vmem:[%s499 + $0x30] sm:$0xf]
      %v1351 = vld [vmem:[%s499 + $0x34] sm:$0xf]
      %v1352 = vld [vmem:[%s499 + $0x38] sm:$0xf]
      %v1353 = vld [vmem:[%s499 + $0x3c] sm:$0xf]
      %v1354 = vld [vmem:[%s502] sm:$0x1]
      %v1356 = vlaneseq
      %v1357 = vshrl.u32 %v1356, 7
      %v1358 = vsub.s32 0, %v1357
      %v1359 = vrot.slane %v1354, %v1358
      %v1377 = vunpack.c.l.b16 %v1338
      %v1378 = vunpack.c.l.b16 %v1339
      %v1379 = vunpack.c.l.b16 %v1340
      %v1380 = vunpack.c.l.b16 %v1341
      %v1381 = vunpack.c.l.b16 %v1342
      %v1382 = vunpack.c.l.b16 %v1343
      %v1383 = vunpack.c.l.b16 %v1344
      %v1384 = vunpack.c.l.b16 %v1345
      %v1385 = vunpack.c.l.b16 %v1346
      %v1386 = vunpack.c.l.b16 %v1347
      %v1387 = vunpack.c.l.b16 %v1348
      %v1388 = vunpack.c.l.b16 %v1349
      %v1389 = vunpack.c.l.b16 %v1350
      %v1390 = vunpack.c.l.b16 %v1351
      %v1391 = vunpack.c.l.b16 %v1352
      %v1392 = vunpack.c.l.b16 %v1353
      %v1393 = vpack.c.b16 %v1378, %v1377
      %v1394 = vpack.c.b16 %v1380, %v1379
      %v1395 = vpack.c.b16 %v1382, %v1381
      %v1396 = vpack.c.b16 %v1384, %v1383
      %v1397 = vpack.c.b16 %v1386, %v1385
      %v1398 = vpack.c.b16 %v1388, %v1387
      %v1399 = vpack.c.b16 %v1390, %v1389
      %v1400 = vpack.c.b16 %v1392, %v1391
      %1409 = vmatprep.subr.bf16.mxu0 0
      %1410 = vmatpush1.bf16.msra.mxu0 %v1393
      %1411 = vmatprep.subr.bf16.mxu0 0
      %1412 = vmatpush1.bf16.msra.mxu0 %v1394
      %1413 = vmatprep.subr.bf16.mxu0 0
      %1414 = vmatpush1.bf16.msra.mxu0 %v1395
      %1415 = vmatprep.subr.bf16.mxu0 0
      %1416 = vmatpush1.bf16.msra.mxu0 %v1396
      %1417 = vmatprep.subr.bf16.mxu0 0
      %1418 = vmatpush1.bf16.msra.mxu0 %v1397
      %1419 = vmatprep.subr.bf16.mxu0 0
      %1420 = vmatpush1.bf16.msra.mxu0 %v1398
      %1421 = vmatprep.subr.bf16.mxu0 0
      %1422 = vmatpush1.bf16.msra.mxu0 %v1399
      %1423 = vmatprep.subr.bf16.mxu0 0
      %1424 = vmatpush1.bf16.msra.mxu0 %v1400
      %1425 = vmatprep.subr.bf16.mxu0 0
      %1426 = vmatpush1.bf16.msra.mxu0 0
      %1427 = vmatprep.subr.bf16.mxu0 0
      %1428 = vmatpush1.bf16.msra.mxu0 0
      %1429 = vmatprep.subr.bf16.mxu0 0
      %1430 = vmatpush1.bf16.msra.mxu0 0
      %1431 = vmatprep.subr.bf16.mxu0 0
      %1432 = vmatpush1.bf16.msra.mxu0 0
      %1433 = vmatprep.subr.bf16.mxu0 0
      %1434 = vmatpush1.bf16.msra.mxu0 0
      %1435 = vmatprep.subr.bf16.mxu0 0
      %1436 = vmatpush1.bf16.msra.mxu0 0
      %1437 = vmatprep.subr.bf16.mxu0 0
      %1438 = vmatpush1.bf16.msra.mxu0 0
      %1439 = vmatprep.subr.bf16.mxu0 0
      %1440 = vmatpush1.bf16.msra.mxu0 0
      %1441 = vmatprep.mubr.bf16.mxu0 0
      %1442 = vmatmul.mubr.bf16.gmra.mrb[0].mxu0 %v1330
      %v1443 = vpop.f32.mrb[0].mxu0
      %v1444 = vadd.f32 %v1359, %v1443
      %v1445 = vpop.f32.mrb[0].mxu0
      %v1446 = vpop.f32.mrb[0].mxu0
      %v1447 = vadd.f32 %v1359, %v1446
      %v1448 = vpop.f32.mrb[0].mxu0
      %1449 = vmatprep.mubr.bf16.mxu0 0
      %1450 = vmatmul.mubr.bf16.gmra.mrb[0].mxu0 %v1331
      %v1451 = vpop.f32.mrb[0].mxu0
      %v1452 = vadd.f32 %v1359, %v1451
      %v1453 = vpop.f32.mrb[0].mxu0
      %v1454 = vpop.f32.mrb[0].mxu0
      %v1455 = vadd.f32 %v1359, %v1454
      %v1456 = vpop.f32.mrb[0].mxu0
      %1457 = vmatprep.mubr.bf16.mxu0 0
      %1458 = vmatmul.mubr.bf16.gmra.mrb[0].mxu0 %v1332
      %v1459 = vpop.f32.mrb[0].mxu0
      %v1460 = vadd.f32 %v1359, %v1459
      %v1461 = vpop.f32.mrb[0].mxu0
      %v1462 = vpop.f32.mrb[0].mxu0
      %v1463 = vadd.f32 %v1359, %v1462
      %v1464 = vpop.f32.mrb[0].mxu0
      %1465 = vmatprep.mubr.bf16.mxu0 0
      %1466 = vmatmul.mubr.bf16.gmra.mrb[0].mxu0 %v1333
      %v1467 = vpop.f32.mrb[0].mxu0
      %v1468 = vadd.f32 %v1359, %v1467
      %v1469 = vpop.f32.mrb[0].mxu0
      %v1470 = vpop.f32.mrb[0].mxu0
      %v1471 = vadd.f32 %v1359, %v1470
      %v1472 = vpop.f32.mrb[0].mxu0
      %1473 = vmatprep.mubr.bf16.mxu0 0
      %1474 = vmatmul.mubr.bf16.gmra.mrb[0].mxu0 %v1334
      %v1475 = vpop.f32.mrb[0].mxu0
      %v1476 = vadd.f32 %v1359, %v1475
      %v1477 = vpop.f32.mrb[0].mxu0
      %v1478 = vpop.f32.mrb[0].mxu0
      %v1479 = vadd.f32 %v1359, %v1478
      %v1480 = vpop.f32.mrb[0].mxu0
      %1481 = vmatprep.mubr.bf16.mxu0 0
      %1482 = vmatmul.mubr.bf16.gmra.mrb[0].mxu0 %v1335
      %v1483 = vpop.f32.mrb[0].mxu0
      %v1484 = vadd.f32 %v1359, %v1483
      %v1485 = vpop.f32.mrb[0].mxu0
      %v1486 = vpop.f32.mrb[0].mxu0
      %v1487 = vadd.f32 %v1359, %v1486
      %v1488 = vpop.f32.mrb[0].mxu0
      %1489 = vmatprep.mubr.bf16.mxu0 0
      %1490 = vmatmul.mubr.bf16.gmra.mrb[0].mxu0 %v1336
      %v1491 = vpop.f32.mrb[0].mxu0
      %v1492 = vadd.f32 %v1359, %v1491
      %v1493 = vpop.f32.mrb[0].mxu0
      %v1494 = vpop.f32.mrb[0].mxu0
      %v1495 = vadd.f32 %v1359, %v1494
      %v1496 = vpop.f32.mrb[0].mxu0
      %1497 = vmatprep.mubr.bf16.mxu0 0
      %1498 = vmatmul.mubr.bf16.gmra.mrb[0].mxu0 %v1337
      %v1499 = vpop.f32.mrb[0].mxu0
      %v1500 = vadd.f32 %v1359, %v1499
      %v1501 = vpop.f32.mrb[0].mxu0
      %v1502 = vpop.f32.mrb[0].mxu0
      %v1503 = vadd.f32 %v1359, %v1502
      %v1504 = vpop.f32.mrb[0].mxu0
      %1505 = vdwg.mxu0
      %p1506 = scmp.lt.s32.totalorder %s23, 2
      // Predicated region
      $region73: #{gin_forward.1} parent=67 // pred_check
        %p1507 = pneg %p1506
      $region74: #{gin_forward.1} parent=67 // pred_check_branch
        %1509 = sbr.rel (%p1507) target = $region76
      $region75: #{gin_forward.1} parent=67 // pred_region
        %v1510 = vmax.f32 %v1444, 0.0
        %v1511 = vmax.f32 %v1447, 0.0
        %v1512 = vmax.f32 %v1452, 0.0
        %v1513 = vmax.f32 %v1455, 0.0
        %v1514 = vmax.f32 %v1460, 0.0
        %v1515 = vmax.f32 %v1463, 0.0
        %v1516 = vmax.f32 %v1468, 0.0
        %v1517 = vmax.f32 %v1471, 0.0
        %v1518 = vmax.f32 %v1476, 0.0
        %v1519 = vmax.f32 %v1479, 0.0
        %v1520 = vmax.f32 %v1484, 0.0
        %v1521 = vmax.f32 %v1487, 0.0
        %v1522 = vmax.f32 %v1492, 0.0
        %v1523 = vmax.f32 %v1495, 0.0
        %v1524 = vmax.f32 %v1500, 0.0
        %v1525 = vmax.f32 %v1503, 0.0
        %1526 = vst [vmem:[%s12] sm:$0xff] %v1510
        %1527 = vst [vmem:[%s12 + $0x8] sm:$0xff] %v1511
        %1528 = vst [vmem:[%s12 + $0x10] sm:$0xff] %v1512
        %1529 = vst [vmem:[%s12 + $0x18] sm:$0xff] %v1513
        %1530 = vst [vmem:[%s12 + $0x20] sm:$0xff] %v1514
        %1531 = vst [vmem:[%s12 + $0x28] sm:$0xff] %v1515
        %1532 = vst [vmem:[%s12 + $0x30] sm:$0xff] %v1516
        %1533 = vst [vmem:[%s12 + $0x38] sm:$0xff] %v1517
        %1534 = vst [vmem:[%s12 + $0x40] sm:$0xff] %v1518
        %1535 = vst [vmem:[%s12 + $0x48] sm:$0xff] %v1519
        %1536 = vst [vmem:[%s12 + $0x50] sm:$0xff] %v1520
        %1537 = vst [vmem:[%s12 + $0x58] sm:$0xff] %v1521
        %1538 = vst [vmem:[%s12 + $0x60] sm:$0xff] %v1522
        %1539 = vst [vmem:[%s12 + $0x68] sm:$0xff] %v1523
        %1540 = vst [vmem:[%s12 + $0x70] sm:$0xff] %v1524
        %1541 = vst [vmem:[%s12 + $0x78] sm:$0xff] %v1525
      $region76: #{gin_forward.1} parent=67 // pred_fallthru
        _
      %p1542 = scmp.eq.s32.totalorder %s23, 2
      // Predicated region
      $region77: #{gin_forward.1} parent=67 // pred_check
        %p1543 = pneg %p1542
      $region78: #{gin_forward.1} parent=67 // pred_check_branch
        %1545 = sbr.rel (%p1543) target = $region80
      $region79: #{gin_forward.1} parent=67 // pred_region
        %1546 = vst [vmem:[%s12] sm:$0xff] %v1444
        %1547 = vst [vmem:[%s12 + $0x8] sm:$0xff] %v1447
        %1548 = vst [vmem:[%s12 + $0x10] sm:$0xff] %v1452
        %1549 = vst [vmem:[%s12 + $0x18] sm:$0xff] %v1455
        %1550 = vst [vmem:[%s12 + $0x20] sm:$0xff] %v1460
        %1551 = vst [vmem:[%s12 + $0x28] sm:$0xff] %v1463
        %1552 = vst [vmem:[%s12 + $0x30] sm:$0xff] %v1468
        %1553 = vst [vmem:[%s12 + $0x38] sm:$0xff] %v1471
        %1554 = vst [vmem:[%s12 + $0x40] sm:$0xff] %v1476
        %1555 = vst [vmem:[%s12 + $0x48] sm:$0xff] %v1479
        %1556 = vst [vmem:[%s12 + $0x50] sm:$0xff] %v1484
        %1557 = vst [vmem:[%s12 + $0x58] sm:$0xff] %v1487
        %1558 = vst [vmem:[%s12 + $0x60] sm:$0xff] %v1492
        %1559 = vst [vmem:[%s12 + $0x68] sm:$0xff] %v1495
        %1560 = vst [vmem:[%s12 + $0x70] sm:$0xff] %v1500
        %1561 = vst [vmem:[%s12 + $0x78] sm:$0xff] %v1503
      $region80: #{gin_forward.1} parent=67 // pred_fallthru
        _
      // Predicated region
      $region81: #{gin_forward.1} parent=67 // pred_check
        %p1562 = pneg %p328
      $region82: #{gin_forward.1} parent=67 // pred_check_branch
        %1564 = sbr.rel (%p1562) target = $region84
      $region83: #{gin_forward.1} parent=67 // pred_region
        _
      $region84: #{gin_forward.1} parent=67 // pred_fallthru
        _
      // Predicated region
      $region85: #{gin_forward.1} parent=67 // pred_check
        %p1565 = pneg %p328
      $region86: #{gin_forward.1} parent=67 // pred_check_branch
        %1567 = sbr.rel (%p1565) target = $region88
      $region87: #{gin_forward.1} parent=67 // pred_region
        _
      $region88: #{gin_forward.1} parent=67 // pred_fallthru
        _
    $region68: #{gin_forward.1} parent=5 // pred_fallthru
      _
    %p1568 = scmp.le.s32.totalorder 2, %s18
    // Predicated region
    $region89: #{gin_forward.1} parent=5 // pred_check
      %p1569 = pneg %p1568
    $region90: #{gin_forward.1} parent=5 // pred_check_branch
      %1571 = sbr.rel (%p1569) target = $region92
    $region91: #{gin_forward.1} parent=5 // pred_region
      %s1572 = ssub.s32 %s18, 2
    $region92: #{gin_forward.1} parent=5 // pred_fallthru
      _
  $region6: #{gin_forward.1} parent=0 // loop_footer
    %s22 = sadd.s32 1, %s18
  $region7: #{gin_forward.1} parent=0 // loop_footer_branch
    %17 = sbr.rel target = $region3
  $region8: #{gin_forward.1} parent=0 // loop_exit
    _

</llo_original>
